<compile_context>
chip_gen: v7x
topology: tpu7x:2x2x1
jax: 0.10.0
libtpu: 0.0.40
codegen_flags: <defaults>
</compile_context>

<pallas_src>
import functools

import jax
import jax.numpy as jnp
from jax.experimental import pallas as pl
from jax.experimental.pallas import tpu as pltpu


def _round_up(x, m):
    return ((x + m - 1) // m) * m


def _pair(v):
    if isinstance(v, int):
        return (v, v)
    return tuple(v)


def _fused_conv_relu_kernel(xa_ref, xb_ref, w_ref, b_ref, o_ref, *,
                            KH, KW, Wp, TQ):
    # xa_ref: (C, TQ)        current lane tile of the flattened padded image
    # xb_ref: (C, TQ)        next lane tile (halo for the shifted reads)
    # w_ref : (KH*KW, OC, C) conv weights, one (OC, C) slab per tap
    # b_ref : (OC, 1)        bias
    # o_ref : (OC, TQ)       lane-dense output tile
    xx = jnp.concatenate([xa_ref[...], xb_ref[...]], axis=-1)        # (C, 2*TQ)
    acc = jnp.zeros(o_ref.shape, jnp.float32)
    for kh in range(KH):
        for kw in range(KW):
            dk = kh * Wp + kw                                        # static shift
            acc = acc + jnp.dot(w_ref[kh * KW + kw],                 # (OC, C)
                                xx[:, dk:dk + TQ],                   # (C, TQ)
                                preferred_element_type=jnp.float32)
    acc = acc + b_ref[...]                                           # bias over lanes
    o_ref[...] = jnp.maximum(acc, 0.0).astype(o_ref.dtype)


@functools.partial(jax.jit, static_argnames=("stride", "padding"))
def conv_relu_block(x_nchw, weight, bias, *, stride, padding):
    """Conv2d(stride, padding) + ReLU.

    x_nchw : (N, C, H, W)  float32
    weight : (OC, C, KH, KW)  (PyTorch nn.Conv2d layout)
    bias   : (OC,)
    returns: (N, OC, OH, OW)
    """
    N, C, H, W = x_nchw.shape
    OC, _, KH, KW = weight.shape
    sh, sw = _pair(stride)

    if isinstance(padding, str):
        if padding == "valid":
            ph, pw = 0, 0
        elif padding == "same":
            # TODO(synk): asymmetric 'same' padding for even kernels not handled.
            ph, pw = (KH - 1) // 2, (KW - 1) // 2
        else:
            raise ValueError(f"unsupported padding: {padding}")
    else:
        ph, pw = _pair(padding)

    OH = (H + 2 * ph - KH) // sh + 1
    OW = (W + 2 * pw - KW) // sw + 1

    # Dense (stride-1) geometry on the zero-padded image; strided outputs are
    # subsampled from the dense result (exact; free for the common stride=1).
    Hp, Wp = H + 2 * ph, W + 2 * pw
    OH1, OW1 = Hp - KH + 1, Wp - KW + 1

    Q_valid = OH1 * Wp                     # flattened dense pixels (junk cols at row ends)
    halo = (KH - 1) * Wp + (KW - 1)        # largest flattened tap shift

    # Lane tile: big (up to 1024), multiple of 128, and >= halo so a single
    # adjacent tile suffices as halo.
    TQ = max(_round_up(max(halo, 1), 128),
             min(1024, _round_up(Q_valid, 128)))
    n_tiles = -(-Q_valid // TQ)
    Q_out = n_tiles * TQ
    Q_in = (n_tiles + 1) * TQ              # +1 tile so halo block (t+1) always exists

    # Pad once (conv zero padding + small flattened tail), then flatten spatial.
    xp = jnp.pad(x_nchw, ((0, 0), (0, 0), (ph, ph), (pw, pw)))
    x_flat = xp.reshape(N, C, Hp * Wp)
    x_flat = jnp.pad(x_flat, ((0, 0), (0, 0), (0, Q_in - Hp * Wp)))

    # weight (OC, C, KH, KW) -> (KH*KW, OC, C); bias -> (OC, 1)
    w_r = jnp.transpose(weight, (2, 3, 0, 1)).reshape(KH * KW, OC, C)
    b_r = bias.reshape(OC, 1).astype(jnp.float32)

    kernel = functools.partial(_fused_conv_relu_kernel,
                               KH=KH, KW=KW, Wp=Wp, TQ=TQ)

    out_flat = pl.pallas_call(
        kernel,
        out_shape=jax.ShapeDtypeStruct((N, OC, Q_out), x_nchw.dtype),
        grid_spec=pltpu.PrefetchScalarGridSpec(
            num_scalar_prefetch=0,
            grid=(N, n_tiles),
            in_specs=[
                pl.BlockSpec((None, C, TQ), lambda n, t: (n, 0, t)),      # tile t
                pl.BlockSpec((None, C, TQ), lambda n, t: (n, 0, t + 1)),  # halo t+1
                pl.BlockSpec((KH * KW, OC, C), lambda n, t: (0, 0, 0)),   # weights
                pl.BlockSpec((OC, 1), lambda n, t: (0, 0)),               # bias
            ],
            out_specs=pl.BlockSpec((None, OC, TQ), lambda n, t: (n, 0, t)),
        ),
        compiler_params=pltpu.CompilerParams(
            dimension_semantics=("parallel", "parallel"),
            vmem_limit_bytes=48 * 1024 * 1024),
    )(x_flat, x_flat, w_r, b_r)

    # (N, OC, Q) -> (N, OC, OH1, OW1) via slice+reshape only (no transpose),
    # then stride subsample.
    dense = out_flat[:, :, :Q_valid].reshape(N, OC, OH1, Wp)[:, :, :, :OW1]
    out = dense[:, :, ::sh, ::sw][:, :, :OH, :OW]
    return out


if __name__ == "__main__":
    # ConvReluBlock(in_channels=4, out_channels=8, kernel=(3,3),
    #               stride=(1,1), padding=(1,1))
    N, C_IN, H, W = 2, 4, 16, 16
    C_OUT, KH, KW = 8, 3, 3
    stride, padding = (1, 1), (1, 1)

    key = jax.random.PRNGKey(0)
    kx, kw, kb = jax.random.split(key, 3)

    x = jax.random.normal(kx, (N, C_IN, H, W), dtype=jnp.float32)
    fan_in = C_IN * KH * KW
    bound = 1.0 / (fan_in ** 0.5)
    weight = jax.random.uniform(kw, (C_OUT, C_IN, KH, KW),
                                minval=-bound, maxval=bound, dtype=jnp.float32)
    bias = jax.random.uniform(kb, (C_OUT,),
                              minval=-bound, maxval=bound, dtype=jnp.float32)

    out = conv_relu_block(x, weight, bias, stride=stride, padding=padding)
    out = jax.block_until_ready(out)

    # sanity check against XLA conv + relu reference
    ref = jax.lax.conv_general_dilated(
        x, weight, window_strides=stride,
        padding=[(padding[0], padding[0]), (padding[1], padding[1])],
        dimension_numbers=("NCHW", "OIHW", "NCHW"))
    ref = jnp.maximum(ref + bias[None, :, None, None], 0.0)
    assert out.shape == (N, C_OUT, H, W)
    assert jnp.allclose(out, ref, atol=1e-4, rtol=1e-4)

    print("KERNEL_OK")
</pallas_src>

<mosaic_0001>
module attributes {stable_mosaic.version = 11 : i64} {
  func.func @_fused_conv_relu_kernel(%arg0: i32, %arg1: i32, %arg2: memref<1x4x384xf32, #tpu.memory_space<vmem>>, %arg3: memref<1x4x384xf32, #tpu.memory_space<vmem>>, %arg4: memref<9x8x4xf32, #tpu.memory_space<vmem>>, %arg5: memref<8x1xf32, #tpu.memory_space<vmem>>, %arg6: memref<1x8x384xf32, #tpu.memory_space<vmem>>) attributes {dimension_semantics = [#tpu.dimension_semantics<parallel>, #tpu.dimension_semantics<parallel>], iteration_bounds = array<i64: 2, 1>, scalar_prefetch = 0 : i64, scratch_operands = 0 : i64, tpu.core_type = #tpu.core_type<tc>, window_params = [{transform_indices = @transform_0, window_bounds = array<i64: 1, 4, 384>}, {transform_indices = @transform_1, window_bounds = array<i64: 1, 4, 384>}, {pipeline_mode = #tpu.pipeline_mode<synchronous>, transform_indices = @transform_2, window_bounds = array<i64: 9, 8, 4>}, {pipeline_mode = #tpu.pipeline_mode<synchronous>, transform_indices = @transform_3, window_bounds = array<i64: 8, 1>}, {transform_indices = @transform_4, window_bounds = array<i64: 1, 8, 384>}]} {
    %c0 = arith.constant 0 : index
    %c0_0 = arith.constant 0 : index
    %c0_1 = arith.constant 0 : index
    %0 = vector.load %arg2[%c0, %c0_0, %c0_1] : memref<1x4x384xf32, #tpu.memory_space<vmem>>, vector<1x4x384xf32>
    %1 = vector.shape_cast %0 : vector<1x4x384xf32> to vector<4x384xf32>
    %c0_2 = arith.constant 0 : index
    %c0_3 = arith.constant 0 : index
    %c0_4 = arith.constant 0 : index
    %2 = vector.load %arg3[%c0_2, %c0_3, %c0_4] : memref<1x4x384xf32, #tpu.memory_space<vmem>>, vector<1x4x384xf32>
    %3 = vector.shape_cast %2 : vector<1x4x384xf32> to vector<4x384xf32>
    %4 = tpu.concatenate %1, %3 in 1 : vector<4x384xf32>, vector<4x384xf32> -> vector<4x768xf32>
    %cst = arith.constant 0.000000e+00 : f32
    %5 = vector.broadcast %cst : f32 to vector<8x384xf32>
    %c0_5 = arith.constant 0 : index
    %c0_6 = arith.constant 0 : index
    %c0_7 = arith.constant 0 : index
    %6 = vector.load %arg4[%c0_5, %c0_6, %c0_7] : memref<9x8x4xf32, #tpu.memory_space<vmem>>, vector<1x8x4xf32>
    %7 = vector.shape_cast %6 : vector<1x8x4xf32> to vector<8x4xf32>
    %8 = vector.extract_strided_slice %4 {offsets = [0, 0], sizes = [4, 384], strides = [1, 1]} : vector<4x768xf32> to vector<4x384xf32>
    %cst_8 = arith.constant dense<0.000000e+00> : vector<8x384xf32>
    %9 = tpu.matmul %7, %8, %cst_8 {dimension_numbers = #tpu.dot_dimension_numbers<[1], [0], [0], [1], [0, 0, 1, 1], [], []>} : vector<8x4xf32>, vector<4x384xf32>, vector<8x384xf32> -> vector<8x384xf32>
    %10 = arith.addf %5, %9 : vector<8x384xf32>
    %c1 = arith.constant 1 : index
    %c0_9 = arith.constant 0 : index
    %c0_10 = arith.constant 0 : index
    %11 = vector.load %arg4[%c1, %c0_9, %c0_10] : memref<9x8x4xf32, #tpu.memory_space<vmem>>, vector<1x8x4xf32>
    %12 = vector.shape_cast %11 : vector<1x8x4xf32> to vector<8x4xf32>
    %13 = vector.extract_strided_slice %4 {offsets = [0, 1], sizes = [4, 384], strides = [1, 1]} : vector<4x768xf32> to vector<4x384xf32>
    %cst_11 = arith.constant dense<0.000000e+00> : vector<8x384xf32>
    %14 = tpu.matmul %12, %13, %cst_11 {dimension_numbers = #tpu.dot_dimension_numbers<[1], [0], [0], [1], [0, 0, 1, 1], [], []>} : vector<8x4xf32>, vector<4x384xf32>, vector<8x384xf32> -> vector<8x384xf32>
    %15 = arith.addf %10, %14 : vector<8x384xf32>
    %c2 = arith.constant 2 : index
    %c0_12 = arith.constant 0 : index
    %c0_13 = arith.constant 0 : index
    %16 = vector.load %arg4[%c2, %c0_12, %c0_13] : memref<9x8x4xf32, #tpu.memory_space<vmem>>, vector<1x8x4xf32>
    %17 = vector.shape_cast %16 : vector<1x8x4xf32> to vector<8x4xf32>
    %18 = vector.extract_strided_slice %4 {offsets = [0, 2], sizes = [4, 384], strides = [1, 1]} : vector<4x768xf32> to vector<4x384xf32>
    %cst_14 = arith.constant dense<0.000000e+00> : vector<8x384xf32>
    %19 = tpu.matmul %17, %18, %cst_14 {dimension_numbers = #tpu.dot_dimension_numbers<[1], [0], [0], [1], [0, 0, 1, 1], [], []>} : vector<8x4xf32>, vector<4x384xf32>, vector<8x384xf32> -> vector<8x384xf32>
    %20 = arith.addf %15, %19 : vector<8x384xf32>
    %c3 = arith.constant 3 : index
    %c0_15 = arith.constant 0 : index
    %c0_16 = arith.constant 0 : index
    %21 = vector.load %arg4[%c3, %c0_15, %c0_16] : memref<9x8x4xf32, #tpu.memory_space<vmem>>, vector<1x8x4xf32>
    %22 = vector.shape_cast %21 : vector<1x8x4xf32> to vector<8x4xf32>
    %23 = vector.extract_strided_slice %4 {offsets = [0, 18], sizes = [4, 384], strides = [1, 1]} : vector<4x768xf32> to vector<4x384xf32>
    %cst_17 = arith.constant dense<0.000000e+00> : vector<8x384xf32>
    %24 = tpu.matmul %22, %23, %cst_17 {dimension_numbers = #tpu.dot_dimension_numbers<[1], [0], [0], [1], [0, 0, 1, 1], [], []>} : vector<8x4xf32>, vector<4x384xf32>, vector<8x384xf32> -> vector<8x384xf32>
    %25 = arith.addf %20, %24 : vector<8x384xf32>
    %c4 = arith.constant 4 : index
    %c0_18 = arith.constant 0 : index
    %c0_19 = arith.constant 0 : index
    %26 = vector.load %arg4[%c4, %c0_18, %c0_19] : memref<9x8x4xf32, #tpu.memory_space<vmem>>, vector<1x8x4xf32>
    %27 = vector.shape_cast %26 : vector<1x8x4xf32> to vector<8x4xf32>
    %28 = vector.extract_strided_slice %4 {offsets = [0, 19], sizes = [4, 384], strides = [1, 1]} : vector<4x768xf32> to vector<4x384xf32>
    %cst_20 = arith.constant dense<0.000000e+00> : vector<8x384xf32>
    %29 = tpu.matmul %27, %28, %cst_20 {dimension_numbers = #tpu.dot_dimension_numbers<[1], [0], [0], [1], [0, 0, 1, 1], [], []>} : vector<8x4xf32>, vector<4x384xf32>, vector<8x384xf32> -> vector<8x384xf32>
    %30 = arith.addf %25, %29 : vector<8x384xf32>
    %c5 = arith.constant 5 : index
    %c0_21 = arith.constant 0 : index
    %c0_22 = arith.constant 0 : index
    %31 = vector.load %arg4[%c5, %c0_21, %c0_22] : memref<9x8x4xf32, #tpu.memory_space<vmem>>, vector<1x8x4xf32>
    %32 = vector.shape_cast %31 : vector<1x8x4xf32> to vector<8x4xf32>
    %33 = vector.extract_strided_slice %4 {offsets = [0, 20], sizes = [4, 384], strides = [1, 1]} : vector<4x768xf32> to vector<4x384xf32>
    %cst_23 = arith.constant dense<0.000000e+00> : vector<8x384xf32>
    %34 = tpu.matmul %32, %33, %cst_23 {dimension_numbers = #tpu.dot_dimension_numbers<[1], [0], [0], [1], [0, 0, 1, 1], [], []>} : vector<8x4xf32>, vector<4x384xf32>, vector<8x384xf32> -> vector<8x384xf32>
    %35 = arith.addf %30, %34 : vector<8x384xf32>
    %c6 = arith.constant 6 : index
    %c0_24 = arith.constant 0 : index
    %c0_25 = arith.constant 0 : index
    %36 = vector.load %arg4[%c6, %c0_24, %c0_25] : memref<9x8x4xf32, #tpu.memory_space<vmem>>, vector<1x8x4xf32>
    %37 = vector.shape_cast %36 : vector<1x8x4xf32> to vector<8x4xf32>
    %38 = vector.extract_strided_slice %4 {offsets = [0, 36], sizes = [4, 384], strides = [1, 1]} : vector<4x768xf32> to vector<4x384xf32>
    %cst_26 = arith.constant dense<0.000000e+00> : vector<8x384xf32>
    %39 = tpu.matmul %37, %38, %cst_26 {dimension_numbers = #tpu.dot_dimension_numbers<[1], [0], [0], [1], [0, 0, 1, 1], [], []>} : vector<8x4xf32>, vector<4x384xf32>, vector<8x384xf32> -> vector<8x384xf32>
    %40 = arith.addf %35, %39 : vector<8x384xf32>
    %c7 = arith.constant 7 : index
    %c0_27 = arith.constant 0 : index
    %c0_28 = arith.constant 0 : index
    %41 = vector.load %arg4[%c7, %c0_27, %c0_28] : memref<9x8x4xf32, #tpu.memory_space<vmem>>, vector<1x8x4xf32>
    %42 = vector.shape_cast %41 : vector<1x8x4xf32> to vector<8x4xf32>
    %43 = vector.extract_strided_slice %4 {offsets = [0, 37], sizes = [4, 384], strides = [1, 1]} : vector<4x768xf32> to vector<4x384xf32>
    %cst_29 = arith.constant dense<0.000000e+00> : vector<8x384xf32>
    %44 = tpu.matmul %42, %43, %cst_29 {dimension_numbers = #tpu.dot_dimension_numbers<[1], [0], [0], [1], [0, 0, 1, 1], [], []>} : vector<8x4xf32>, vector<4x384xf32>, vector<8x384xf32> -> vector<8x384xf32>
    %45 = arith.addf %40, %44 : vector<8x384xf32>
    %c8 = arith.constant 8 : index
    %c0_30 = arith.constant 0 : index
    %c0_31 = arith.constant 0 : index
    %46 = vector.load %arg4[%c8, %c0_30, %c0_31] : memref<9x8x4xf32, #tpu.memory_space<vmem>>, vector<1x8x4xf32>
    %47 = vector.shape_cast %46 : vector<1x8x4xf32> to vector<8x4xf32>
    %48 = vector.extract_strided_slice %4 {offsets = [0, 38], sizes = [4, 384], strides = [1, 1]} : vector<4x768xf32> to vector<4x384xf32>
    %cst_32 = arith.constant dense<0.000000e+00> : vector<8x384xf32>
    %49 = tpu.matmul %47, %48, %cst_32 {dimension_numbers = #tpu.dot_dimension_numbers<[1], [0], [0], [1], [0, 0, 1, 1], [], []>} : vector<8x4xf32>, vector<4x384xf32>, vector<8x384xf32> -> vector<8x384xf32>
    %50 = arith.addf %45, %49 : vector<8x384xf32>
    %c0_33 = arith.constant 0 : index
    %c0_34 = arith.constant 0 : index
    %51 = vector.load %arg5[%c0_33, %c0_34] : memref<8x1xf32, #tpu.memory_space<vmem>>, vector<8x1xf32>
    %52 = vector.broadcast %51 : vector<8x1xf32> to vector<8x384xf32>
    %53 = arith.addf %50, %52 : vector<8x384xf32>
    %cst_35 = arith.constant 0.000000e+00 : f32
    %54 = vector.broadcast %cst_35 : f32 to vector<8x384xf32>
    %55 = arith.maximumf %53, %54 : vector<8x384xf32>
    %c0_36 = arith.constant 0 : index
    %c0_37 = arith.constant 0 : index
    %c0_38 = arith.constant 0 : index
    %56 = vector.load %arg6[%c0_36, %c0_37, %c0_38] : memref<1x8x384xf32, #tpu.memory_space<vmem>>, vector<1x8x384xf32>
    %57 = vector.shape_cast %56 : vector<1x8x384xf32> to vector<8x384xf32>
    %58 = vector.shape_cast %55 : vector<8x384xf32> to vector<1x8x384xf32>
    tpu.vector_store %arg6[%c0_36, %c0_37, %c0_38], %58 {strides = array<i32>} : memref<1x8x384xf32, #tpu.memory_space<vmem>>, vector<1x8x384xf32>,
    return
  }
  func.func @transform_0(%arg0: i32, %arg1: i32) -> (i32, i32, i32) {
    %c0_i32 = arith.constant 0 : i32
    %c0_i32_0 = arith.constant 0 : i32
    return %arg0, %c0_i32, %arg1 : i32, i32, i32
  }
  func.func @transform_1(%arg0: i32, %arg1: i32) -> (i32, i32, i32) {
    %c1_i32 = arith.constant 1 : i32
    %0 = arith.addi %arg1, %c1_i32 : i32
    %c0_i32 = arith.constant 0 : i32
    %c0_i32_0 = arith.constant 0 : i32
    return %arg0, %c0_i32, %0 : i32, i32, i32
  }
  func.func @transform_2(%arg0: i32, %arg1: i32) -> (i32, i32, i32) {
    %c0_i32 = arith.constant 0 : i32
    %c0_i32_0 = arith.constant 0 : i32
    %c0_i32_1 = arith.constant 0 : i32
    %c0_i32_2 = arith.constant 0 : i32
    return %c0_i32, %c0_i32_0, %c0_i32_1 : i32, i32, i32
  }
  func.func @transform_3(%arg0: i32, %arg1: i32) -> (i32, i32) {
    %c0_i32 = arith.constant 0 : i32
    %c0_i32_0 = arith.constant 0 : i32
    %c0_i32_1 = arith.constant 0 : i32
    return %c0_i32, %c0_i32_0 : i32, i32
  }
  func.func @transform_4(%arg0: i32, %arg1: i32) -> (i32, i32, i32) {
    %c0_i32 = arith.constant 0 : i32
    %c0_i32_0 = arith.constant 0 : i32
    return %arg0, %c0_i32, %arg1 : i32, i32, i32
  }
}

</mosaic_0001>

<llo_original>
// kernel: conv_relu_block.1
$region0: #{conv_relu_block.1}
  #allocation0 [shape = 'u32[]', space=smem, size = 0x4, offset = 0x4, fixed_abs, tag = 'smem constant byte address 0x4 - core index']
  #allocation1 [shape = 'u32[144,128]{1,0:T(1,128)}', space=vmem, size = 0x12000, scoped, tag = 'internal scratch']
  %s0 = inlined_call_operand.vmem [shape: f32[2,4,768], index: 0, kind: input, shape index: {}, may-alias: {0,1}]
  %s1 = inlined_call_operand.vmem [shape: f32[2,4,768], index: 1, kind: input, shape index: {}, may-alias: {0,1}]
  %s2 = inlined_call_operand.vmem [shape: f32[9,8,4], index: 2, kind: input, shape index: {}]
  %s3 = inlined_call_operand.vmem [shape: f32[8,1], index: 3, kind: input, shape index: {}]
  %s4 = inlined_call_operand.vmem [shape: f32[2,8,384], index: 4, kind: output, shape index: {}]
  %s5 = sld [smem:[#allocation0]]
  $region49: #{conv_relu_block.1} parent=0
    _
  %s7 = ssub.s32 1, %s5
  %s8 = scalar_select 0, %s7, %s5
  loop: start=0, step=1, limit=4
  $region2: #{conv_relu_block.1} parent=0 // loop_pre_header
    _
  $region3: #{conv_relu_block.1} parent=0 // loop_header
    %s10 = sphi 0, %s14
    %p11 = scmp.ge.s32.totalorder %s10, 4
    %s17 = sphi 0, %s29
    %s18 = sphi 0, %s25
    %s19 = sphi 0, %s17
    %s20 = sphi 0, %s18
    %s21 = sphi 0, %s19
    %s22 = sphi 0, %s20
    %s34 = sphi 0, %s36
    %s37 = sphi 0, %s34
    %s38 = sphi 0, %s37
    %s54 = sphi 0, %s38
    %s64 = sphi 0, %s66
    %s67 = sphi 0, %s64
    %s68 = sphi 0, %s67
    %s84 = sphi 0, %s68
    %s88 = sphi 0, %s88
    %s90 = sphi 0, %s88
    %s91 = sphi 0, %s90
    %s105 = sphi 0, %s91
    %s109 = sphi 0, %s109
    %s111 = sphi 0, %s109
    %s112 = sphi 0, %s111
    %s126 = sphi 0, %s112
    %s134 = sphi 0, %s136
    %s137 = sphi 0, %s134
    %s138 = sphi 0, %s137
    %s154 = sphi 0, %s138
  $region4: #{conv_relu_block.1} parent=0 // loop_header_branch
    %13 = sbr.rel (%p11) target = $region8
  $region5: #{conv_relu_block.1} parent=0 // loop_body
    %s15 = ssub.s32 %s10, 1
    %s16 = ssub.s32 %s10, 2
    %s23 = sadd.s32 1, %s18
    %p24 = scmp.ge.s32.totalorder %s23, 1
    %s25 = scalar_select %p24, 0, %s23
    %s26 = sadd.s32 1, %s17
    %s27 = scalar_select %p24, %s26, %s17
    %p28 = scmp.ge.s32.totalorder %s27, 2
    %s29 = scalar_select %p28, 0, %s27
    %s30 = ssub.s32 %s17, %s29
    %s31 = ssub.s32 %s18, %s25
    %s32 = sor.u32 %s30, %s31
    %p33 = scmp.eq.s32.totalorder %s32, 0
    %s35 = sadd.s32 %s34, 1
    %s36 = scalar_select %p33, %s34, %s35
    %p39 = pneg %p33
    %p40 = scmp.eq.s32.totalorder %s10, 1
    %p41 = por %p39, %p40
    %p42 = scmp.ne.s32.totalorder %s34, %s37
    %p43 = scmp.eq.s32.totalorder %s10, 0
    %p44 = por %p42, %p43
    %p45 = scmp.ne.s32.totalorder %s34, %s37
    %p46 = scmp.eq.s32.totalorder %s15, 1
    %p47 = por %p45, %p46
    %p48 = scmp.ne.s32.totalorder %s37, %s38
    %p49 = scmp.eq.s32.totalorder %s15, 0
    %p50 = por %p48, %p49
    %p51 = scmp.ne.s32.totalorder %s37, %s38
    %p52 = scmp.eq.s32.totalorder %s16, 1
    %p53 = por %p51, %p52
    %p55 = scmp.ne.s32.totalorder %s38, %s54
    %p56 = scmp.eq.s32.totalorder %s16, 0
    %p57 = por %p55, %p56
    %s58 = sadd.s32 %s18, 1
    %s59 = sadd.s32 %s25, 1
    %s60 = ssub.s32 %s17, %s29
    %s61 = ssub.s32 %s58, %s59
    %s62 = sor.u32 %s60, %s61
    %p63 = scmp.eq.s32.totalorder %s62, 0
    %s65 = sadd.s32 %s64, 1
    %s66 = scalar_select %p63, %s64, %s65
    %p69 = pneg %p63
    %p70 = scmp.eq.s32.totalorder %s10, 1
    %p71 = por %p69, %p70
    %p72 = scmp.ne.s32.totalorder %s64, %s67
    %p73 = scmp.eq.s32.totalorder %s10, 0
    %p74 = por %p72, %p73
    %p75 = scmp.ne.s32.totalorder %s64, %s67
    %p76 = scmp.eq.s32.totalorder %s15, 1
    %p77 = por %p75, %p76
    %p78 = scmp.ne.s32.totalorder %s67, %s68
    %p79 = scmp.eq.s32.totalorder %s15, 0
    %p80 = por %p78, %p79
    %p81 = scmp.ne.s32.totalorder %s67, %s68
    %p82 = scmp.eq.s32.totalorder %s16, 1
    %p83 = por %p81, %p82
    %p85 = scmp.ne.s32.totalorder %s68, %s84
    %p86 = scmp.eq.s32.totalorder %s16, 0
    %p87 = por %p85, %p86
    %s89 = sadd.s32 %s88, 1
    %p92 = scmp.eq.s32.totalorder %s10, 1
    %p93 = scmp.ne.s32.totalorder %s88, %s90
    %p94 = scmp.eq.s32.totalorder %s10, 0
    %p95 = por %p93, %p94
    %p96 = scmp.ne.s32.totalorder %s88, %s90
    %p97 = scmp.eq.s32.totalorder %s15, 1
    %p98 = por %p96, %p97
    %p99 = scmp.ne.s32.totalorder %s90, %s91
    %p100 = scmp.eq.s32.totalorder %s15, 0
    %p101 = por %p99, %p100
    %p102 = scmp.ne.s32.totalorder %s90, %s91
    %p103 = scmp.eq.s32.totalorder %s16, 1
    %p104 = por %p102, %p103
    %p106 = scmp.ne.s32.totalorder %s91, %s105
    %p107 = scmp.eq.s32.totalorder %s16, 0
    %p108 = por %p106, %p107
    %s110 = sadd.s32 %s109, 1
    %p113 = scmp.eq.s32.totalorder %s10, 1
    %p114 = scmp.ne.s32.totalorder %s109, %s111
    %p115 = scmp.eq.s32.totalorder %s10, 0
    %p116 = por %p114, %p115
    %p117 = scmp.ne.s32.totalorder %s109, %s111
    %p118 = scmp.eq.s32.totalorder %s15, 1
    %p119 = por %p117, %p118
    %p120 = scmp.ne.s32.totalorder %s111, %s112
    %p121 = scmp.eq.s32.totalorder %s15, 0
    %p122 = por %p120, %p121
    %p123 = scmp.ne.s32.totalorder %s111, %s112
    %p124 = scmp.eq.s32.totalorder %s16, 1
    %p125 = por %p123, %p124
    %p127 = scmp.ne.s32.totalorder %s112, %s126
    %p128 = scmp.eq.s32.totalorder %s16, 0
    %p129 = por %p127, %p128
    %s130 = ssub.s32 %s17, %s29
    %s131 = ssub.s32 %s18, %s25
    %s132 = sor.u32 %s130, %s131
    %p133 = scmp.eq.s32.totalorder %s132, 0
    %s135 = sadd.s32 %s134, 1
    %s136 = scalar_select %p133, %s134, %s135
    %p139 = pneg %p133
    %p140 = scmp.eq.s32.totalorder %s10, 1
    %p141 = por %p139, %p140
    %p142 = scmp.ne.s32.totalorder %s134, %s137
    %p143 = scmp.eq.s32.totalorder %s10, 0
    %p144 = por %p142, %p143
    %p145 = scmp.ne.s32.totalorder %s134, %s137
    %p146 = scmp.eq.s32.totalorder %s15, 1
    %p147 = por %p145, %p146
    %p148 = scmp.ne.s32.totalorder %s137, %s138
    %p149 = scmp.eq.s32.totalorder %s15, 0
    %p150 = por %p148, %p149
    %p151 = scmp.ne.s32.totalorder %s137, %s138
    %p152 = scmp.eq.s32.totalorder %s16, 1
    %p153 = por %p151, %p152
    %p155 = scmp.ne.s32.totalorder %s138, %s154
    %p156 = scmp.eq.s32.totalorder %s16, 0
    %p157 = por %p155, %p156
    %p158 = scmp.le.s32.totalorder 1, %s10
    %p159 = scmp.lt.s32.totalorder %s10, 3
    %p160 = pnand %p158, %p159
    %p161 = pneg %p160
    // Predicated region
    $region9: #{conv_relu_block.1} parent=5 // pred_check
      _
    $region10: #{conv_relu_block.1} parent=5 // pred_check_branch
      %163 = sbr.rel (%p160) target = $region12
    $region11: #{conv_relu_block.1} parent=5 // pred_region
      %s164 = ssub.s32 %s10, 1
      // Predicated region
      $region13: #{conv_relu_block.1} parent=11 // pred_check
        %p165 = pneg %p101
      $region14: #{conv_relu_block.1} parent=11 // pred_check_branch
        %167 = sbr.rel (%p165) target = $region16
      $region15: #{conv_relu_block.1} parent=11 // pred_region
        _
      $region16: #{conv_relu_block.1} parent=11 // pred_fallthru
        _
      // Predicated region
      $region17: #{conv_relu_block.1} parent=11 // pred_check
        %p168 = pneg %p122
      $region18: #{conv_relu_block.1} parent=11 // pred_check_branch
        %170 = sbr.rel (%p168) target = $region20
      $region19: #{conv_relu_block.1} parent=11 // pred_region
        _
      $region20: #{conv_relu_block.1} parent=11 // pred_fallthru
        _
    $region12: #{conv_relu_block.1} parent=5 // pred_fallthru
      _
    %p171 = scmp.lt.s32.totalorder %s10, 2
    // Predicated region
    $region21: #{conv_relu_block.1} parent=5 // pred_check
      %p172 = pneg %p171
    $region22: #{conv_relu_block.1} parent=5 // pred_check_branch
      %174 = sbr.rel (%p172) target = $region24
    $region23: #{conv_relu_block.1} parent=5 // pred_region
      // Predicated region
      $region25: #{conv_relu_block.1} parent=23 // pred_check
        %p175 = pneg %p44
      $region26: #{conv_relu_block.1} parent=23 // pred_check_branch
        %177 = sbr.rel (%p175) target = $region28
      $region27: #{conv_relu_block.1} parent=23 // pred_region
        %s178 = smul.u32 3, %s18
        %p179 = scmp.lt.s32.totalorder %s17, 1
        %s180 = scalar_select %p179, %s17, 1
        %p181 = scmp.lt.s32.totalorder %s178, 5
        %s182 = scalar_select %p181, %s178, 5
        %s183 = smul.addr %s180, 6
        %s184 = sadd.s32 %s182, %s183
        %s185 = smul.addr %s184, 4
        %s186 = scalar_lea.vmem %s0, %s185
        %s187 = smul.u32 3, %s18
      $region28: #{conv_relu_block.1} parent=23 // pred_fallthru
        _
      // Predicated region
      $region29: #{conv_relu_block.1} parent=23 // pred_check
        %p188 = pneg %p74
      $region30: #{conv_relu_block.1} parent=23 // pred_check_branch
        %190 = sbr.rel (%p188) target = $region32
      $region31: #{conv_relu_block.1} parent=23 // pred_region
        %s191 = sadd.s32 %s18, 1
        %s192 = smul.u32 3, %s191
        %p193 = scmp.lt.s32.totalorder %s17, 1
        %s194 = scalar_select %p193, %s17, 1
        %p195 = scmp.lt.s32.totalorder %s192, 5
        %s196 = scalar_select %p195, %s192, 5
        %s197 = smul.addr %s194, 6
        %s198 = sadd.s32 %s196, %s197
        %s199 = smul.addr %s198, 4
        %s200 = scalar_lea.vmem %s1, %s199
        %s201 = sadd.s32 %s18, 1
        %s202 = smul.u32 3, %s201
      $region32: #{conv_relu_block.1} parent=23 // pred_fallthru
        _
    $region24: #{conv_relu_block.1} parent=5 // pred_fallthru
      _
    %p203 = scmp.le.s32.totalorder 1, %s10
    %p204 = scmp.lt.s32.totalorder %s10, 3
    %p205 = pnand %p203, %p204
    %p206 = pneg %p205
    // Predicated region
    $region33: #{conv_relu_block.1} parent=5 // pred_check
      _
    $region34: #{conv_relu_block.1} parent=5 // pred_check_branch
      %208 = sbr.rel (%p205) target = $region36
    $region35: #{conv_relu_block.1} parent=5 // pred_region
      %s209 = ssub.s32 %s10, 1
      %s210 = smul.u32 3, %s20
      %p211 = scmp.lt.s32.totalorder %s19, 1
      %s212 = scalar_select %p211, %s19, 1
      %p213 = scmp.lt.s32.totalorder %s210, 5
      %s214 = scalar_select %p213, %s210, 5
      %s215 = smul.addr %s212, 6
      %s216 = sadd.s32 %s214, %s215
      %s217 = smul.addr %s216, 4
      %s218 = scalar_lea.vmem %s0, %s217
      %p219 = pneg %p50
      %p220 = pneg %p47
      %s221 = sadd.s32 %s20, 1
      %s222 = smul.u32 3, %s221
      %p223 = scmp.lt.s32.totalorder %s19, 1
      %s224 = scalar_select %p223, %s19, 1
      %p225 = scmp.lt.s32.totalorder %s222, 5
      %s226 = scalar_select %p225, %s222, 5
      %s227 = smul.addr %s224, 6
      %s228 = sadd.s32 %s226, %s227
      %s229 = smul.addr %s228, 4
      %s230 = scalar_lea.vmem %s1, %s229
      %p231 = pneg %p80
      %p232 = pneg %p77
      %p233 = pneg %p101
      %p234 = pneg %p98
      %p235 = pneg %p122
      %p236 = pneg %p119
      %p237 = pneg %p150
      %p238 = pneg %p147
      %s239 = smul.u32 3, %s20
      %p240 = scmp.lt.s32.totalorder %s19, 1
      %s241 = scalar_select %p240, %s19, 1
      %p242 = scmp.lt.s32.totalorder %s239, 2
      %s243 = scalar_select %p242, %s239, 2
      %s244 = smul.addr %s241, 3
      %s245 = sadd.s32 %s243, %s244
      %s246 = smul.addr %s245, 8
      %s247 = scalar_lea.vmem %s4, %s246
      %s248 = smul.u32 3, %s20
      %p249 = scmp.lt.s32.totalorder %s19, 1
      %s250 = scalar_select %p249, %s19, 1
      %p251 = scmp.lt.s32.totalorder %s248, 5
      %s252 = scalar_select %p251, %s248, 5
      %s253 = smul.addr %s250, 6
      %s254 = sadd.s32 %s252, %s253
      %s255 = smul.addr %s254, 4
      %s256 = scalar_lea.vmem %s0, %s255
      %s257 = smul.u32 3, %s20
      %s258 = sadd.s32 %s20, 1
      %s259 = smul.u32 3, %s258
      %p260 = scmp.lt.s32.totalorder %s19, 1
      %s261 = scalar_select %p260, %s19, 1
      %p262 = scmp.lt.s32.totalorder %s259, 5
      %s263 = scalar_select %p262, %s259, 5
      %s264 = smul.addr %s261, 6
      %s265 = sadd.s32 %s263, %s264
      %s266 = smul.addr %s265, 4
      %s267 = scalar_lea.vmem %s1, %s266
      %s268 = sadd.s32 %s20, 1
      %s269 = smul.u32 3, %s268
      %s270 = smul.u32 3, %s20
      %p271 = scmp.lt.s32.totalorder %s19, 1
      %s272 = scalar_select %p271, %s19, 1
      %p273 = scmp.lt.s32.totalorder %s270, 2
      %s274 = scalar_select %p273, %s270, 2
      %s275 = smul.addr %s272, 3
      %s276 = sadd.s32 %s274, %s275
      %s277 = smul.addr %s276, 8
      %s278 = scalar_lea.vmem %s4, %s277
      %s279 = smul.u32 3, %s20
      %v280 = vld [vmem:[%s256] sm:$0xff]
      %v281 = vld [vmem:[%s256 + $0x8] sm:$0xf]
      %v282 = vld [vmem:[%s267] sm:$0xff]
      %v285 = vcombine.high %v280, %v280
      %v287 = vld [vmem:[%s2] sm:$0xff]
      %s288 = scalar_lea.vmem %s2, 8
      %v289 = vld [vmem:[%s288] sm:$0xff]
      %290 = vrot.lane.b32.xlu0 %v280, 127
      %v291 = vpop.permute.xlu0 %290
      %292 = vrot.lane.b32.xlu0 %v285, 127
      %v293 = vpop.permute.xlu0 %292
      %294 = vrot.lane.b32.xlu0 %v281, 127
      %v295 = vpop.permute.xlu0 %294
      %296 = vrot.lane.b32.xlu0 %v282, 127
      %v297 = vpop.permute.xlu0 %296
      %vm298 = vcmask 1039360
      %v299 = vsel %vm298, %v291, %v293
      %v300 = vsel %vm298, %v293, %v295
      %v301 = vsel %vm298, %v295, %v297
      %vm302 = vcmask 31744
      %v304 = vsel %vm302, %v289, 0
      %vm306 = vcmask 1043456
      %v307 = vsel %vm306, %v299, 0
      %v309 = vsel %vm306, %v300, 0
      %v311 = vsel %vm306, %v301, 0
      %313 = vmatprep.subr.mxu0 %v309
      %314 = vmatpush1.msra.mxu0 %v307
      %315 = vmatprep.subr.mxu0 0.0
      %316 = vmatpush1.msra.mxu0 0.0
      %317 = vmatprep.subr.mxu0 0.0
      %318 = vmatpush1.msra.mxu0 0.0
      %319 = vmatprep.subr.mxu0 0.0
      %320 = vmatpush1.msra.mxu0 0.0
      %321 = vmatprep.subr.mxu0 0.0
      %322 = vmatpush1.msra.mxu0 0.0
      %323 = vmatprep.subr.mxu0 0.0
      %324 = vmatpush1.msra.mxu0 0.0
      %325 = vmatprep.subr.mxu0 0.0
      %326 = vmatpush1.msra.mxu0 0.0
      %327 = vmatprep.subr.mxu0 0.0
      %328 = vmatpush1.msra.mxu0 0.0
      %329 = vmatprep.subr.mxu0 0.0
      %330 = vmatpush1.msra.mxu0 0.0
      %331 = vmatprep.subr.mxu0 0.0
      %332 = vmatpush1.msra.mxu0 0.0
      %333 = vmatprep.subr.mxu0 0.0
      %334 = vmatpush1.msra.mxu0 0.0
      %335 = vmatprep.subr.mxu0 0.0
      %336 = vmatpush1.msra.mxu0 0.0
      %337 = vmatprep.subr.mxu0 0.0
      %338 = vmatpush1.msra.mxu0 0.0
      %339 = vmatprep.subr.mxu0 0.0
      %340 = vmatpush1.msra.mxu0 0.0
      %341 = vmatprep.subr.mxu0 0.0
      %342 = vmatpush1.msra.mxu0 0.0
      %343 = vmatprep.subr.mxu0 0.0
      %344 = vmatpush1.msra.mxu0 0.0
      %345 = vmatprep.subr.mxu0 0.0
      %346 = vmatpush1.msra.mxu0 0.0
      %347 = vmatprep.subr.mxu0 0.0
      %348 = vmatpush1.msra.mxu0 0.0
      %349 = vmatprep.subr.mxu0 0.0
      %350 = vmatpush1.msra.mxu0 0.0
      %351 = vmatprep.subr.mxu0 0.0
      %352 = vmatpush1.msra.mxu0 0.0
      %353 = vmatprep.subr.mxu0 0.0
      %354 = vmatpush1.msra.mxu0 0.0
      %355 = vmatprep.subr.mxu0 0.0
      %356 = vmatpush1.msra.mxu0 0.0
      %357 = vmatprep.subr.mxu0 0.0
      %358 = vmatpush1.msra.mxu0 0.0
      %359 = vmatprep.subr.mxu0 0.0
      %360 = vmatpush1.msra.mxu0 0.0
      %361 = vmatprep.subr.mxu0 0.0
      %362 = vmatpush1.msra.mxu0 0.0
      %363 = vmatprep.subr.mxu0 0.0
      %364 = vmatpush1.msra.mxu0 0.0
      %365 = vmatprep.subr.mxu0 0.0
      %366 = vmatpush1.msra.mxu0 0.0
      %367 = vmatprep.subr.mxu0 0.0
      %368 = vmatpush1.msra.mxu0 0.0
      %369 = vmatprep.subr.mxu0 0.0
      %370 = vmatpush1.msra.mxu0 0.0
      %371 = vmatprep.subr.mxu0 0.0
      %372 = vmatpush1.msra.mxu0 0.0
      %373 = vmatprep.subr.mxu0 0.0
      %374 = vmatpush1.msra.mxu0 0.0
      %375 = vmatprep.subr.mxu0 0.0
      %376 = vmatpush1.msra.mxu0 0.0
      %377 = vmatprep.mubr.f32.mxu0 0.0
      %378 = vmatmul.mubr.f32.gmra.mrb[0].mxu0 %v304
      %v379 = vpop.f32.mrb[0].mxu0
      %v380 = vadd.f32 0.0, %v379
      %v381 = vpop.f32.mrb[0].mxu0
      %v382 = vadd.f32 0.0, %v381
      %383 = vdwg.mxu0
      %384 = vmatprep.subr.mxu0 0.0
      %385 = vmatpush1.msra.mxu0 %v311
      %386 = vmatprep.subr.mxu0 0.0
      %387 = vmatpush1.msra.mxu0 0.0
      %388 = vmatprep.subr.mxu0 0.0
      %389 = vmatpush1.msra.mxu0 0.0
      %390 = vmatprep.subr.mxu0 0.0
      %391 = vmatpush1.msra.mxu0 0.0
      %392 = vmatprep.subr.mxu0 0.0
      %393 = vmatpush1.msra.mxu0 0.0
      %394 = vmatprep.subr.mxu0 0.0
      %395 = vmatpush1.msra.mxu0 0.0
      %396 = vmatprep.subr.mxu0 0.0
      %397 = vmatpush1.msra.mxu0 0.0
      %398 = vmatprep.subr.mxu0 0.0
      %399 = vmatpush1.msra.mxu0 0.0
      %400 = vmatprep.subr.mxu0 0.0
      %401 = vmatpush1.msra.mxu0 0.0
      %402 = vmatprep.subr.mxu0 0.0
      %403 = vmatpush1.msra.mxu0 0.0
      %404 = vmatprep.subr.mxu0 0.0
      %405 = vmatpush1.msra.mxu0 0.0
      %406 = vmatprep.subr.mxu0 0.0
      %407 = vmatpush1.msra.mxu0 0.0
      %408 = vmatprep.subr.mxu0 0.0
      %409 = vmatpush1.msra.mxu0 0.0
      %410 = vmatprep.subr.mxu0 0.0
      %411 = vmatpush1.msra.mxu0 0.0
      %412 = vmatprep.subr.mxu0 0.0
      %413 = vmatpush1.msra.mxu0 0.0
      %414 = vmatprep.subr.mxu0 0.0
      %415 = vmatpush1.msra.mxu0 0.0
      %416 = vmatprep.subr.mxu0 0.0
      %417 = vmatpush1.msra.mxu0 0.0
      %418 = vmatprep.subr.mxu0 0.0
      %419 = vmatpush1.msra.mxu0 0.0
      %420 = vmatprep.subr.mxu0 0.0
      %421 = vmatpush1.msra.mxu0 0.0
      %422 = vmatprep.subr.mxu0 0.0
      %423 = vmatpush1.msra.mxu0 0.0
      %424 = vmatprep.subr.mxu0 0.0
      %425 = vmatpush1.msra.mxu0 0.0
      %426 = vmatprep.subr.mxu0 0.0
      %427 = vmatpush1.msra.mxu0 0.0
      %428 = vmatprep.subr.mxu0 0.0
      %429 = vmatpush1.msra.mxu0 0.0
      %430 = vmatprep.subr.mxu0 0.0
      %431 = vmatpush1.msra.mxu0 0.0
      %432 = vmatprep.subr.mxu0 0.0
      %433 = vmatpush1.msra.mxu0 0.0
      %434 = vmatprep.subr.mxu0 0.0
      %435 = vmatpush1.msra.mxu0 0.0
      %436 = vmatprep.subr.mxu0 0.0
      %437 = vmatpush1.msra.mxu0 0.0
      %438 = vmatprep.subr.mxu0 0.0
      %439 = vmatpush1.msra.mxu0 0.0
      %440 = vmatprep.subr.mxu0 0.0
      %441 = vmatpush1.msra.mxu0 0.0
      %442 = vmatprep.subr.mxu0 0.0
      %443 = vmatpush1.msra.mxu0 0.0
      %444 = vmatprep.subr.mxu0 0.0
      %445 = vmatpush1.msra.mxu0 0.0
      %446 = vmatprep.subr.mxu0 0.0
      %447 = vmatpush1.msra.mxu0 0.0
      %448 = vmatprep.mubr.f32.mxu0 0.0
      %449 = vmatmul.mubr.f32.gmra.mrb[0].mxu0 %v304
      %v450 = vpop.f32.mrb[0].mxu0
      %v451 = vadd.f32 0.0, %v450
      %v452 = vpop.f32.mrb[0].mxu0
      %453 = vdwg.mxu0
      %v455 = vsel %vm302, %v287, 0
      %v457 = vsel %vm306, %v280, 0
      %v459 = vsel %vm306, %v285, 0
      %v461 = vsel %vm306, %v281, 0
      %463 = vmatprep.subr.mxu0 %v459
      %464 = vmatpush1.msra.mxu0 %v457
      %465 = vmatprep.subr.mxu0 0.0
      %466 = vmatpush1.msra.mxu0 0.0
      %467 = vmatprep.subr.mxu0 0.0
      %468 = vmatpush1.msra.mxu0 0.0
      %469 = vmatprep.subr.mxu0 0.0
      %470 = vmatpush1.msra.mxu0 0.0
      %471 = vmatprep.subr.mxu0 0.0
      %472 = vmatpush1.msra.mxu0 0.0
      %473 = vmatprep.subr.mxu0 0.0
      %474 = vmatpush1.msra.mxu0 0.0
      %475 = vmatprep.subr.mxu0 0.0
      %476 = vmatpush1.msra.mxu0 0.0
      %477 = vmatprep.subr.mxu0 0.0
      %478 = vmatpush1.msra.mxu0 0.0
      %479 = vmatprep.subr.mxu0 0.0
      %480 = vmatpush1.msra.mxu0 0.0
      %481 = vmatprep.subr.mxu0 0.0
      %482 = vmatpush1.msra.mxu0 0.0
      %483 = vmatprep.subr.mxu0 0.0
      %484 = vmatpush1.msra.mxu0 0.0
      %485 = vmatprep.subr.mxu0 0.0
      %486 = vmatpush1.msra.mxu0 0.0
      %487 = vmatprep.subr.mxu0 0.0
      %488 = vmatpush1.msra.mxu0 0.0
      %489 = vmatprep.subr.mxu0 0.0
      %490 = vmatpush1.msra.mxu0 0.0
      %491 = vmatprep.subr.mxu0 0.0
      %492 = vmatpush1.msra.mxu0 0.0
      %493 = vmatprep.subr.mxu0 0.0
      %494 = vmatpush1.msra.mxu0 0.0
      %495 = vmatprep.subr.mxu0 0.0
      %496 = vmatpush1.msra.mxu0 0.0
      %497 = vmatprep.subr.mxu0 0.0
      %498 = vmatpush1.msra.mxu0 0.0
      %499 = vmatprep.subr.mxu0 0.0
      %500 = vmatpush1.msra.mxu0 0.0
      %501 = vmatprep.subr.mxu0 0.0
      %502 = vmatpush1.msra.mxu0 0.0
      %503 = vmatprep.subr.mxu0 0.0
      %504 = vmatpush1.msra.mxu0 0.0
      %505 = vmatprep.subr.mxu0 0.0
      %506 = vmatpush1.msra.mxu0 0.0
      %507 = vmatprep.subr.mxu0 0.0
      %508 = vmatpush1.msra.mxu0 0.0
      %509 = vmatprep.subr.mxu0 0.0
      %510 = vmatpush1.msra.mxu0 0.0
      %511 = vmatprep.subr.mxu0 0.0
      %512 = vmatpush1.msra.mxu0 0.0
      %513 = vmatprep.subr.mxu0 0.0
      %514 = vmatpush1.msra.mxu0 0.0
      %515 = vmatprep.subr.mxu0 0.0
      %516 = vmatpush1.msra.mxu0 0.0
      %517 = vmatprep.subr.mxu0 0.0
      %518 = vmatpush1.msra.mxu0 0.0
      %519 = vmatprep.subr.mxu0 0.0
      %520 = vmatpush1.msra.mxu0 0.0
      %521 = vmatprep.subr.mxu0 0.0
      %522 = vmatpush1.msra.mxu0 0.0
      %523 = vmatprep.subr.mxu0 0.0
      %524 = vmatpush1.msra.mxu0 0.0
      %525 = vmatprep.subr.mxu0 0.0
      %526 = vmatpush1.msra.mxu0 0.0
      %527 = vmatprep.mubr.f32.mxu0 0.0
      %528 = vmatmul.mubr.f32.gmra.mrb[0].mxu0 %v455
      %v529 = vpop.f32.mrb[0].mxu0
      %v530 = vadd.f32 %v380, %v529
      %v531 = vpop.f32.mrb[0].mxu0
      %v532 = vadd.f32 %v382, %v531
      %533 = vdwg.mxu0
      %534 = vmatprep.subr.mxu0 0.0
      %535 = vmatpush1.msra.mxu0 %v461
      %536 = vmatprep.subr.mxu0 0.0
      %537 = vmatpush1.msra.mxu0 0.0
      %538 = vmatprep.subr.mxu0 0.0
      %539 = vmatpush1.msra.mxu0 0.0
      %540 = vmatprep.subr.mxu0 0.0
      %541 = vmatpush1.msra.mxu0 0.0
      %542 = vmatprep.subr.mxu0 0.0
      %543 = vmatpush1.msra.mxu0 0.0
      %544 = vmatprep.subr.mxu0 0.0
      %545 = vmatpush1.msra.mxu0 0.0
      %546 = vmatprep.subr.mxu0 0.0
      %547 = vmatpush1.msra.mxu0 0.0
      %548 = vmatprep.subr.mxu0 0.0
      %549 = vmatpush1.msra.mxu0 0.0
      %550 = vmatprep.subr.mxu0 0.0
      %551 = vmatpush1.msra.mxu0 0.0
      %552 = vmatprep.subr.mxu0 0.0
      %553 = vmatpush1.msra.mxu0 0.0
      %554 = vmatprep.subr.mxu0 0.0
      %555 = vmatpush1.msra.mxu0 0.0
      %556 = vmatprep.subr.mxu0 0.0
      %557 = vmatpush1.msra.mxu0 0.0
      %558 = vmatprep.subr.mxu0 0.0
      %559 = vmatpush1.msra.mxu0 0.0
      %560 = vmatprep.subr.mxu0 0.0
      %561 = vmatpush1.msra.mxu0 0.0
      %562 = vmatprep.subr.mxu0 0.0
      %563 = vmatpush1.msra.mxu0 0.0
      %564 = vmatprep.subr.mxu0 0.0
      %565 = vmatpush1.msra.mxu0 0.0
      %566 = vmatprep.subr.mxu0 0.0
      %567 = vmatpush1.msra.mxu0 0.0
      %568 = vmatprep.subr.mxu0 0.0
      %569 = vmatpush1.msra.mxu0 0.0
      %570 = vmatprep.subr.mxu0 0.0
      %571 = vmatpush1.msra.mxu0 0.0
      %572 = vmatprep.subr.mxu0 0.0
      %573 = vmatpush1.msra.mxu0 0.0
      %574 = vmatprep.subr.mxu0 0.0
      %575 = vmatpush1.msra.mxu0 0.0
      %576 = vmatprep.subr.mxu0 0.0
      %577 = vmatpush1.msra.mxu0 0.0
      %578 = vmatprep.subr.mxu0 0.0
      %579 = vmatpush1.msra.mxu0 0.0
      %580 = vmatprep.subr.mxu0 0.0
      %581 = vmatpush1.msra.mxu0 0.0
      %582 = vmatprep.subr.mxu0 0.0
      %583 = vmatpush1.msra.mxu0 0.0
      %584 = vmatprep.subr.mxu0 0.0
      %585 = vmatpush1.msra.mxu0 0.0
      %586 = vmatprep.subr.mxu0 0.0
      %587 = vmatpush1.msra.mxu0 0.0
      %588 = vmatprep.subr.mxu0 0.0
      %589 = vmatpush1.msra.mxu0 0.0
      %590 = vmatprep.subr.mxu0 0.0
      %591 = vmatpush1.msra.mxu0 0.0
      %592 = vmatprep.subr.mxu0 0.0
      %593 = vmatpush1.msra.mxu0 0.0
      %594 = vmatprep.subr.mxu0 0.0
      %595 = vmatpush1.msra.mxu0 0.0
      %596 = vmatprep.subr.mxu0 0.0
      %597 = vmatpush1.msra.mxu0 0.0
      %598 = vmatprep.mubr.f32.mxu0 0.0
      %599 = vmatmul.mubr.f32.gmra.mrb[0].mxu0 %v455
      %v600 = vpop.f32.mrb[0].mxu0
      %v601 = vadd.f32 %v451, %v600
      %v602 = vpop.f32.mrb[0].mxu0
      %603 = vdwg.mxu0
      %s604 = scalar_lea.vmem %s2, 16
      %v605 = vld [vmem:[%s604] sm:$0xff]
      %606 = vrot.lane.b32.xlu0 %v280, 126
      %v607 = vpop.permute.xlu0 %606
      %608 = vrot.lane.b32.xlu0 %v285, 126
      %v609 = vpop.permute.xlu0 %608
      %610 = vrot.lane.b32.xlu0 %v281, 126
      %v611 = vpop.permute.xlu0 %610
      %612 = vrot.lane.b32.xlu0 %v282, 126
      %v613 = vpop.permute.xlu0 %612
      %vm614 = vcmask 1031168
      %v615 = vsel %vm614, %v607, %v609
      %v616 = vsel %vm614, %v609, %v611
      %v617 = vsel %vm614, %v611, %v613
      %v619 = vsel %vm302, %v605, 0
      %v621 = vsel %vm306, %v615, 0
      %v623 = vsel %vm306, %v616, 0
      %v625 = vsel %vm306, %v617, 0
      %627 = vmatprep.subr.mxu0 %v623
      %628 = vmatpush1.msra.mxu0 %v621
      %629 = vmatprep.subr.mxu0 0.0
      %630 = vmatpush1.msra.mxu0 0.0
      %631 = vmatprep.subr.mxu0 0.0
      %632 = vmatpush1.msra.mxu0 0.0
      %633 = vmatprep.subr.mxu0 0.0
      %634 = vmatpush1.msra.mxu0 0.0
      %635 = vmatprep.subr.mxu0 0.0
      %636 = vmatpush1.msra.mxu0 0.0
      %637 = vmatprep.subr.mxu0 0.0
      %638 = vmatpush1.msra.mxu0 0.0
      %639 = vmatprep.subr.mxu0 0.0
      %640 = vmatpush1.msra.mxu0 0.0
      %641 = vmatprep.subr.mxu0 0.0
      %642 = vmatpush1.msra.mxu0 0.0
      %643 = vmatprep.subr.mxu0 0.0
      %644 = vmatpush1.msra.mxu0 0.0
      %645 = vmatprep.subr.mxu0 0.0
      %646 = vmatpush1.msra.mxu0 0.0
      %647 = vmatprep.subr.mxu0 0.0
      %648 = vmatpush1.msra.mxu0 0.0
      %649 = vmatprep.subr.mxu0 0.0
      %650 = vmatpush1.msra.mxu0 0.0
      %651 = vmatprep.subr.mxu0 0.0
      %652 = vmatpush1.msra.mxu0 0.0
      %653 = vmatprep.subr.mxu0 0.0
      %654 = vmatpush1.msra.mxu0 0.0
      %655 = vmatprep.subr.mxu0 0.0
      %656 = vmatpush1.msra.mxu0 0.0
      %657 = vmatprep.subr.mxu0 0.0
      %658 = vmatpush1.msra.mxu0 0.0
      %659 = vmatprep.subr.mxu0 0.0
      %660 = vmatpush1.msra.mxu0 0.0
      %661 = vmatprep.subr.mxu0 0.0
      %662 = vmatpush1.msra.mxu0 0.0
      %663 = vmatprep.subr.mxu0 0.0
      %664 = vmatpush1.msra.mxu0 0.0
      %665 = vmatprep.subr.mxu0 0.0
      %666 = vmatpush1.msra.mxu0 0.0
      %667 = vmatprep.subr.mxu0 0.0
      %668 = vmatpush1.msra.mxu0 0.0
      %669 = vmatprep.subr.mxu0 0.0
      %670 = vmatpush1.msra.mxu0 0.0
      %671 = vmatprep.subr.mxu0 0.0
      %672 = vmatpush1.msra.mxu0 0.0
      %673 = vmatprep.subr.mxu0 0.0
      %674 = vmatpush1.msra.mxu0 0.0
      %675 = vmatprep.subr.mxu0 0.0
      %676 = vmatpush1.msra.mxu0 0.0
      %677 = vmatprep.subr.mxu0 0.0
      %678 = vmatpush1.msra.mxu0 0.0
      %679 = vmatprep.subr.mxu0 0.0
      %680 = vmatpush1.msra.mxu0 0.0
      %681 = vmatprep.subr.mxu0 0.0
      %682 = vmatpush1.msra.mxu0 0.0
      %683 = vmatprep.subr.mxu0 0.0
      %684 = vmatpush1.msra.mxu0 0.0
      %685 = vmatprep.subr.mxu0 0.0
      %686 = vmatpush1.msra.mxu0 0.0
      %687 = vmatprep.subr.mxu0 0.0
      %688 = vmatpush1.msra.mxu0 0.0
      %689 = vmatprep.subr.mxu0 0.0
      %690 = vmatpush1.msra.mxu0 0.0
      %691 = vmatprep.mubr.f32.mxu0 0.0
      %692 = vmatmul.mubr.f32.gmra.mrb[0].mxu0 %v619
      %v693 = vpop.f32.mrb[0].mxu0
      %v694 = vadd.f32 0.0, %v693
      %v695 = vpop.f32.mrb[0].mxu0
      %v696 = vadd.f32 0.0, %v695
      %697 = vdwg.mxu0
      %698 = vmatprep.subr.mxu0 0.0
      %699 = vmatpush1.msra.mxu0 %v625
      %700 = vmatprep.subr.mxu0 0.0
      %701 = vmatpush1.msra.mxu0 0.0
      %702 = vmatprep.subr.mxu0 0.0
      %703 = vmatpush1.msra.mxu0 0.0
      %704 = vmatprep.subr.mxu0 0.0
      %705 = vmatpush1.msra.mxu0 0.0
      %706 = vmatprep.subr.mxu0 0.0
      %707 = vmatpush1.msra.mxu0 0.0
      %708 = vmatprep.subr.mxu0 0.0
      %709 = vmatpush1.msra.mxu0 0.0
      %710 = vmatprep.subr.mxu0 0.0
      %711 = vmatpush1.msra.mxu0 0.0
      %712 = vmatprep.subr.mxu0 0.0
      %713 = vmatpush1.msra.mxu0 0.0
      %714 = vmatprep.subr.mxu0 0.0
      %715 = vmatpush1.msra.mxu0 0.0
      %716 = vmatprep.subr.mxu0 0.0
      %717 = vmatpush1.msra.mxu0 0.0
      %718 = vmatprep.subr.mxu0 0.0
      %719 = vmatpush1.msra.mxu0 0.0
      %720 = vmatprep.subr.mxu0 0.0
      %721 = vmatpush1.msra.mxu0 0.0
      %722 = vmatprep.subr.mxu0 0.0
      %723 = vmatpush1.msra.mxu0 0.0
      %724 = vmatprep.subr.mxu0 0.0
      %725 = vmatpush1.msra.mxu0 0.0
      %726 = vmatprep.subr.mxu0 0.0
      %727 = vmatpush1.msra.mxu0 0.0
      %728 = vmatprep.subr.mxu0 0.0
      %729 = vmatpush1.msra.mxu0 0.0
      %730 = vmatprep.subr.mxu0 0.0
      %731 = vmatpush1.msra.mxu0 0.0
      %732 = vmatprep.subr.mxu0 0.0
      %733 = vmatpush1.msra.mxu0 0.0
      %734 = vmatprep.subr.mxu0 0.0
      %735 = vmatpush1.msra.mxu0 0.0
      %736 = vmatprep.subr.mxu0 0.0
      %737 = vmatpush1.msra.mxu0 0.0
      %738 = vmatprep.subr.mxu0 0.0
      %739 = vmatpush1.msra.mxu0 0.0
      %740 = vmatprep.subr.mxu0 0.0
      %741 = vmatpush1.msra.mxu0 0.0
      %742 = vmatprep.subr.mxu0 0.0
      %743 = vmatpush1.msra.mxu0 0.0
      %744 = vmatprep.subr.mxu0 0.0
      %745 = vmatpush1.msra.mxu0 0.0
      %746 = vmatprep.subr.mxu0 0.0
      %747 = vmatpush1.msra.mxu0 0.0
      %748 = vmatprep.subr.mxu0 0.0
      %749 = vmatpush1.msra.mxu0 0.0
      %750 = vmatprep.subr.mxu0 0.0
      %751 = vmatpush1.msra.mxu0 0.0
      %752 = vmatprep.subr.mxu0 0.0
      %753 = vmatpush1.msra.mxu0 0.0
      %754 = vmatprep.subr.mxu0 0.0
      %755 = vmatpush1.msra.mxu0 0.0
      %756 = vmatprep.subr.mxu0 0.0
      %757 = vmatpush1.msra.mxu0 0.0
      %758 = vmatprep.subr.mxu0 0.0
      %759 = vmatpush1.msra.mxu0 0.0
      %760 = vmatprep.subr.mxu0 0.0
      %761 = vmatpush1.msra.mxu0 0.0
      %762 = vmatprep.mubr.f32.mxu0 0.0
      %763 = vmatmul.mubr.f32.gmra.mrb[0].mxu0 %v619
      %v764 = vpop.f32.mrb[0].mxu0
      %v765 = vadd.f32 0.0, %v764
      %v766 = vpop.f32.mrb[0].mxu0
      %767 = vdwg.mxu0
      %v768 = vadd.f32 %v530, %v694
      %v769 = vadd.f32 %v532, %v696
      %v770 = vadd.f32 %v601, %v765
      %s771 = scalar_lea.vmem %s2, 24
      %v772 = vld [vmem:[%s771] sm:$0xff]
      %773 = vrot.lane.b32.xlu0 %v280, 110
      %v774 = vpop.permute.xlu0 %773
      %775 = vrot.lane.b32.xlu0 %v285, 110
      %v776 = vpop.permute.xlu0 %775
      %777 = vrot.lane.b32.xlu0 %v281, 110
      %v778 = vpop.permute.xlu0 %777
      %779 = vrot.lane.b32.xlu0 %v282, 110
      %v780 = vpop.permute.xlu0 %779
      %vm781 = vcmask 900096
      %v782 = vsel %vm781, %v774, %v776
      %v783 = vsel %vm781, %v776, %v778
      %v784 = vsel %vm781, %v778, %v780
      %v786 = vsel %vm302, %v772, 0
      %v788 = vsel %vm306, %v782, 0
      %v790 = vsel %vm306, %v783, 0
      %v792 = vsel %vm306, %v784, 0
      %794 = vmatprep.subr.mxu0 %v790
      %795 = vmatpush1.msra.mxu0 %v788
      %796 = vmatprep.subr.mxu0 0.0
      %797 = vmatpush1.msra.mxu0 0.0
      %798 = vmatprep.subr.mxu0 0.0
      %799 = vmatpush1.msra.mxu0 0.0
      %800 = vmatprep.subr.mxu0 0.0
      %801 = vmatpush1.msra.mxu0 0.0
      %802 = vmatprep.subr.mxu0 0.0
      %803 = vmatpush1.msra.mxu0 0.0
      %804 = vmatprep.subr.mxu0 0.0
      %805 = vmatpush1.msra.mxu0 0.0
      %806 = vmatprep.subr.mxu0 0.0
      %807 = vmatpush1.msra.mxu0 0.0
      %808 = vmatprep.subr.mxu0 0.0
      %809 = vmatpush1.msra.mxu0 0.0
      %810 = vmatprep.subr.mxu0 0.0
      %811 = vmatpush1.msra.mxu0 0.0
      %812 = vmatprep.subr.mxu0 0.0
      %813 = vmatpush1.msra.mxu0 0.0
      %814 = vmatprep.subr.mxu0 0.0
      %815 = vmatpush1.msra.mxu0 0.0
      %816 = vmatprep.subr.mxu0 0.0
      %817 = vmatpush1.msra.mxu0 0.0
      %818 = vmatprep.subr.mxu0 0.0
      %819 = vmatpush1.msra.mxu0 0.0
      %820 = vmatprep.subr.mxu0 0.0
      %821 = vmatpush1.msra.mxu0 0.0
      %822 = vmatprep.subr.mxu0 0.0
      %823 = vmatpush1.msra.mxu0 0.0
      %824 = vmatprep.subr.mxu0 0.0
      %825 = vmatpush1.msra.mxu0 0.0
      %826 = vmatprep.subr.mxu0 0.0
      %827 = vmatpush1.msra.mxu0 0.0
      %828 = vmatprep.subr.mxu0 0.0
      %829 = vmatpush1.msra.mxu0 0.0
      %830 = vmatprep.subr.mxu0 0.0
      %831 = vmatpush1.msra.mxu0 0.0
      %832 = vmatprep.subr.mxu0 0.0
      %833 = vmatpush1.msra.mxu0 0.0
      %834 = vmatprep.subr.mxu0 0.0
      %835 = vmatpush1.msra.mxu0 0.0
      %836 = vmatprep.subr.mxu0 0.0
      %837 = vmatpush1.msra.mxu0 0.0
      %838 = vmatprep.subr.mxu0 0.0
      %839 = vmatpush1.msra.mxu0 0.0
      %840 = vmatprep.subr.mxu0 0.0
      %841 = vmatpush1.msra.mxu0 0.0
      %842 = vmatprep.subr.mxu0 0.0
      %843 = vmatpush1.msra.mxu0 0.0
      %844 = vmatprep.subr.mxu0 0.0
      %845 = vmatpush1.msra.mxu0 0.0
      %846 = vmatprep.subr.mxu0 0.0
      %847 = vmatpush1.msra.mxu0 0.0
      %848 = vmatprep.subr.mxu0 0.0
      %849 = vmatpush1.msra.mxu0 0.0
      %850 = vmatprep.subr.mxu0 0.0
      %851 = vmatpush1.msra.mxu0 0.0
      %852 = vmatprep.subr.mxu0 0.0
      %853 = vmatpush1.msra.mxu0 0.0
      %854 = vmatprep.subr.mxu0 0.0
      %855 = vmatpush1.msra.mxu0 0.0
      %856 = vmatprep.subr.mxu0 0.0
      %857 = vmatpush1.msra.mxu0 0.0
      %858 = vmatprep.mubr.f32.mxu0 0.0
      %859 = vmatmul.mubr.f32.gmra.mrb[0].mxu0 %v786
      %v860 = vpop.f32.mrb[0].mxu0
      %v861 = vadd.f32 0.0, %v860
      %v862 = vpop.f32.mrb[0].mxu0
      %v863 = vadd.f32 0.0, %v862
      %864 = vdwg.mxu0
      %865 = vmatprep.subr.mxu0 0.0
      %866 = vmatpush1.msra.mxu0 %v792
      %867 = vmatprep.subr.mxu0 0.0
      %868 = vmatpush1.msra.mxu0 0.0
      %869 = vmatprep.subr.mxu0 0.0
      %870 = vmatpush1.msra.mxu0 0.0
      %871 = vmatprep.subr.mxu0 0.0
      %872 = vmatpush1.msra.mxu0 0.0
      %873 = vmatprep.subr.mxu0 0.0
      %874 = vmatpush1.msra.mxu0 0.0
      %875 = vmatprep.subr.mxu0 0.0
      %876 = vmatpush1.msra.mxu0 0.0
      %877 = vmatprep.subr.mxu0 0.0
      %878 = vmatpush1.msra.mxu0 0.0
      %879 = vmatprep.subr.mxu0 0.0
      %880 = vmatpush1.msra.mxu0 0.0
      %881 = vmatprep.subr.mxu0 0.0
      %882 = vmatpush1.msra.mxu0 0.0
      %883 = vmatprep.subr.mxu0 0.0
      %884 = vmatpush1.msra.mxu0 0.0
      %885 = vmatprep.subr.mxu0 0.0
      %886 = vmatpush1.msra.mxu0 0.0
      %887 = vmatprep.subr.mxu0 0.0
      %888 = vmatpush1.msra.mxu0 0.0
      %889 = vmatprep.subr.mxu0 0.0
      %890 = vmatpush1.msra.mxu0 0.0
      %891 = vmatprep.subr.mxu0 0.0
      %892 = vmatpush1.msra.mxu0 0.0
      %893 = vmatprep.subr.mxu0 0.0
      %894 = vmatpush1.msra.mxu0 0.0
      %895 = vmatprep.subr.mxu0 0.0
      %896 = vmatpush1.msra.mxu0 0.0
      %897 = vmatprep.subr.mxu0 0.0
      %898 = vmatpush1.msra.mxu0 0.0
      %899 = vmatprep.subr.mxu0 0.0
      %900 = vmatpush1.msra.mxu0 0.0
      %901 = vmatprep.subr.mxu0 0.0
      %902 = vmatpush1.msra.mxu0 0.0
      %903 = vmatprep.subr.mxu0 0.0
      %904 = vmatpush1.msra.mxu0 0.0
      %905 = vmatprep.subr.mxu0 0.0
      %906 = vmatpush1.msra.mxu0 0.0
      %907 = vmatprep.subr.mxu0 0.0
      %908 = vmatpush1.msra.mxu0 0.0
      %909 = vmatprep.subr.mxu0 0.0
      %910 = vmatpush1.msra.mxu0 0.0
      %911 = vmatprep.subr.mxu0 0.0
      %912 = vmatpush1.msra.mxu0 0.0
      %913 = vmatprep.subr.mxu0 0.0
      %914 = vmatpush1.msra.mxu0 0.0
      %915 = vmatprep.subr.mxu0 0.0
      %916 = vmatpush1.msra.mxu0 0.0
      %917 = vmatprep.subr.mxu0 0.0
      %918 = vmatpush1.msra.mxu0 0.0
      %919 = vmatprep.subr.mxu0 0.0
      %920 = vmatpush1.msra.mxu0 0.0
      %921 = vmatprep.subr.mxu0 0.0
      %922 = vmatpush1.msra.mxu0 0.0
      %923 = vmatprep.subr.mxu0 0.0
      %924 = vmatpush1.msra.mxu0 0.0
      %925 = vmatprep.subr.mxu0 0.0
      %926 = vmatpush1.msra.mxu0 0.0
      %927 = vmatprep.subr.mxu0 0.0
      %928 = vmatpush1.msra.mxu0 0.0
      %929 = vmatprep.mubr.f32.mxu0 0.0
      %930 = vmatmul.mubr.f32.gmra.mrb[0].mxu0 %v786
      %v931 = vpop.f32.mrb[0].mxu0
      %v932 = vadd.f32 0.0, %v931
      %v933 = vpop.f32.mrb[0].mxu0
      %934 = vdwg.mxu0
      %v935 = vadd.f32 %v768, %v861
      %v936 = vadd.f32 %v769, %v863
      %v937 = vadd.f32 %v770, %v932
      %s938 = scalar_lea.vmem %s2, 32
      %v939 = vld [vmem:[%s938] sm:$0xff]
      %940 = vrot.lane.b32.xlu0 %v280, 109
      %v941 = vpop.permute.xlu0 %940
      %942 = vrot.lane.b32.xlu0 %v285, 109
      %v943 = vpop.permute.xlu0 %942
      %944 = vrot.lane.b32.xlu0 %v281, 109
      %v945 = vpop.permute.xlu0 %944
      %946 = vrot.lane.b32.xlu0 %v282, 109
      %v947 = vpop.permute.xlu0 %946
      %vm948 = vcmask 891904
      %v949 = vsel %vm948, %v941, %v943
      %v950 = vsel %vm948, %v943, %v945
      %v951 = vsel %vm948, %v945, %v947
      %v953 = vsel %vm302, %v939, 0
      %v955 = vsel %vm306, %v949, 0
      %v957 = vsel %vm306, %v950, 0
      %v959 = vsel %vm306, %v951, 0
      %961 = vmatprep.subr.mxu0 %v957
      %962 = vmatpush1.msra.mxu0 %v955
      %963 = vmatprep.subr.mxu0 0.0
      %964 = vmatpush1.msra.mxu0 0.0
      %965 = vmatprep.subr.mxu0 0.0
      %966 = vmatpush1.msra.mxu0 0.0
      %967 = vmatprep.subr.mxu0 0.0
      %968 = vmatpush1.msra.mxu0 0.0
      %969 = vmatprep.subr.mxu0 0.0
      %970 = vmatpush1.msra.mxu0 0.0
      %971 = vmatprep.subr.mxu0 0.0
      %972 = vmatpush1.msra.mxu0 0.0
      %973 = vmatprep.subr.mxu0 0.0
      %974 = vmatpush1.msra.mxu0 0.0
      %975 = vmatprep.subr.mxu0 0.0
      %976 = vmatpush1.msra.mxu0 0.0
      %977 = vmatprep.subr.mxu0 0.0
      %978 = vmatpush1.msra.mxu0 0.0
      %979 = vmatprep.subr.mxu0 0.0
      %980 = vmatpush1.msra.mxu0 0.0
      %981 = vmatprep.subr.mxu0 0.0
      %982 = vmatpush1.msra.mxu0 0.0
      %983 = vmatprep.subr.mxu0 0.0
      %984 = vmatpush1.msra.mxu0 0.0
      %985 = vmatprep.subr.mxu0 0.0
      %986 = vmatpush1.msra.mxu0 0.0
      %987 = vmatprep.subr.mxu0 0.0
      %988 = vmatpush1.msra.mxu0 0.0
      %989 = vmatprep.subr.mxu0 0.0
      %990 = vmatpush1.msra.mxu0 0.0
      %991 = vmatprep.subr.mxu0 0.0
      %992 = vmatpush1.msra.mxu0 0.0
      %993 = vmatprep.subr.mxu0 0.0
      %994 = vmatpush1.msra.mxu0 0.0
      %995 = vmatprep.subr.mxu0 0.0
      %996 = vmatpush1.msra.mxu0 0.0
      %997 = vmatprep.subr.mxu0 0.0
      %998 = vmatpush1.msra.mxu0 0.0
      %999 = vmatprep.subr.mxu0 0.0
      %1000 = vmatpush1.msra.mxu0 0.0
      %1001 = vmatprep.subr.mxu0 0.0
      %1002 = vmatpush1.msra.mxu0 0.0
      %1003 = vmatprep.subr.mxu0 0.0
      %1004 = vmatpush1.msra.mxu0 0.0
      %1005 = vmatprep.subr.mxu0 0.0
      %1006 = vmatpush1.msra.mxu0 0.0
      %1007 = vmatprep.subr.mxu0 0.0
      %1008 = vmatpush1.msra.mxu0 0.0
      %1009 = vmatprep.subr.mxu0 0.0
      %1010 = vmatpush1.msra.mxu0 0.0
      %1011 = vmatprep.subr.mxu0 0.0
      %1012 = vmatpush1.msra.mxu0 0.0
      %1013 = vmatprep.subr.mxu0 0.0
      %1014 = vmatpush1.msra.mxu0 0.0
      %1015 = vmatprep.subr.mxu0 0.0
      %1016 = vmatpush1.msra.mxu0 0.0
      %1017 = vmatprep.subr.mxu0 0.0
      %1018 = vmatpush1.msra.mxu0 0.0
      %1019 = vmatprep.subr.mxu0 0.0
      %1020 = vmatpush1.msra.mxu0 0.0
      %1021 = vmatprep.subr.mxu0 0.0
      %1022 = vmatpush1.msra.mxu0 0.0
      %1023 = vmatprep.subr.mxu0 0.0
      %1024 = vmatpush1.msra.mxu0 0.0
      %1025 = vmatprep.mubr.f32.mxu0 0.0
      %1026 = vmatmul.mubr.f32.gmra.mrb[0].mxu0 %v953
      %v1027 = vpop.f32.mrb[0].mxu0
      %v1028 = vadd.f32 0.0, %v1027
      %v1029 = vpop.f32.mrb[0].mxu0
      %v1030 = vadd.f32 0.0, %v1029
      %1031 = vdwg.mxu0
      %1032 = vmatprep.subr.mxu0 0.0
      %1033 = vmatpush1.msra.mxu0 %v959
      %1034 = vmatprep.subr.mxu0 0.0
      %1035 = vmatpush1.msra.mxu0 0.0
      %1036 = vmatprep.subr.mxu0 0.0
      %1037 = vmatpush1.msra.mxu0 0.0
      %1038 = vmatprep.subr.mxu0 0.0
      %1039 = vmatpush1.msra.mxu0 0.0
      %1040 = vmatprep.subr.mxu0 0.0
      %1041 = vmatpush1.msra.mxu0 0.0
      %1042 = vmatprep.subr.mxu0 0.0
      %1043 = vmatpush1.msra.mxu0 0.0
      %1044 = vmatprep.subr.mxu0 0.0
      %1045 = vmatpush1.msra.mxu0 0.0
      %1046 = vmatprep.subr.mxu0 0.0
      %1047 = vmatpush1.msra.mxu0 0.0
      %1048 = vmatprep.subr.mxu0 0.0
      %1049 = vmatpush1.msra.mxu0 0.0
      %1050 = vmatprep.subr.mxu0 0.0
      %1051 = vmatpush1.msra.mxu0 0.0
      %1052 = vmatprep.subr.mxu0 0.0
      %1053 = vmatpush1.msra.mxu0 0.0
      %1054 = vmatprep.subr.mxu0 0.0
      %1055 = vmatpush1.msra.mxu0 0.0
      %1056 = vmatprep.subr.mxu0 0.0
      %1057 = vmatpush1.msra.mxu0 0.0
      %1058 = vmatprep.subr.mxu0 0.0
      %1059 = vmatpush1.msra.mxu0 0.0
      %1060 = vmatprep.subr.mxu0 0.0
      %1061 = vmatpush1.msra.mxu0 0.0
      %1062 = vmatprep.subr.mxu0 0.0
      %1063 = vmatpush1.msra.mxu0 0.0
      %1064 = vmatprep.subr.mxu0 0.0
      %1065 = vmatpush1.msra.mxu0 0.0
      %1066 = vmatprep.subr.mxu0 0.0
      %1067 = vmatpush1.msra.mxu0 0.0
      %1068 = vmatprep.subr.mxu0 0.0
      %1069 = vmatpush1.msra.mxu0 0.0
      %1070 = vmatprep.subr.mxu0 0.0
      %1071 = vmatpush1.msra.mxu0 0.0
      %1072 = vmatprep.subr.mxu0 0.0
      %1073 = vmatpush1.msra.mxu0 0.0
      %1074 = vmatprep.subr.mxu0 0.0
      %1075 = vmatpush1.msra.mxu0 0.0
      %1076 = vmatprep.subr.mxu0 0.0
      %1077 = vmatpush1.msra.mxu0 0.0
      %1078 = vmatprep.subr.mxu0 0.0
      %1079 = vmatpush1.msra.mxu0 0.0
      %1080 = vmatprep.subr.mxu0 0.0
      %1081 = vmatpush1.msra.mxu0 0.0
      %1082 = vmatprep.subr.mxu0 0.0
      %1083 = vmatpush1.msra.mxu0 0.0
      %1084 = vmatprep.subr.mxu0 0.0
      %1085 = vmatpush1.msra.mxu0 0.0
      %1086 = vmatprep.subr.mxu0 0.0
      %1087 = vmatpush1.msra.mxu0 0.0
      %1088 = vmatprep.subr.mxu0 0.0
      %1089 = vmatpush1.msra.mxu0 0.0
      %1090 = vmatprep.subr.mxu0 0.0
      %1091 = vmatpush1.msra.mxu0 0.0
      %1092 = vmatprep.subr.mxu0 0.0
      %1093 = vmatpush1.msra.mxu0 0.0
      %1094 = vmatprep.subr.mxu0 0.0
      %1095 = vmatpush1.msra.mxu0 0.0
      %1096 = vmatprep.mubr.f32.mxu0 0.0
      %1097 = vmatmul.mubr.f32.gmra.mrb[0].mxu0 %v953
      %v1098 = vpop.f32.mrb[0].mxu0
      %v1099 = vadd.f32 0.0, %v1098
      %v1100 = vpop.f32.mrb[0].mxu0
      %1101 = vdwg.mxu0
      %v1102 = vadd.f32 %v935, %v1028
      %v1103 = vadd.f32 %v936, %v1030
      %v1104 = vadd.f32 %v937, %v1099
      %s1105 = scalar_lea.vmem %s2, 40
      %v1106 = vld [vmem:[%s1105] sm:$0xff]
      %1107 = vrot.lane.b32.xlu0 %v280, 108
      %v1108 = vpop.permute.xlu0 %1107
      %1109 = vrot.lane.b32.xlu0 %v285, 108
      %v1110 = vpop.permute.xlu0 %1109
      %1111 = vrot.lane.b32.xlu0 %v281, 108
      %v1112 = vpop.permute.xlu0 %1111
      %1113 = vrot.lane.b32.xlu0 %v282, 108
      %v1114 = vpop.permute.xlu0 %1113
      %vm1115 = vcmask 883712
      %v1116 = vsel %vm1115, %v1108, %v1110
      %v1117 = vsel %vm1115, %v1110, %v1112
      %v1118 = vsel %vm1115, %v1112, %v1114
      %v1120 = vsel %vm302, %v1106, 0
      %v1122 = vsel %vm306, %v1116, 0
      %v1124 = vsel %vm306, %v1117, 0
      %v1126 = vsel %vm306, %v1118, 0
      %1128 = vmatprep.subr.mxu0 %v1124
      %1129 = vmatpush1.msra.mxu0 %v1122
      %1130 = vmatprep.subr.mxu0 0.0
      %1131 = vmatpush1.msra.mxu0 0.0
      %1132 = vmatprep.subr.mxu0 0.0
      %1133 = vmatpush1.msra.mxu0 0.0
      %1134 = vmatprep.subr.mxu0 0.0
      %1135 = vmatpush1.msra.mxu0 0.0
      %1136 = vmatprep.subr.mxu0 0.0
      %1137 = vmatpush1.msra.mxu0 0.0
      %1138 = vmatprep.subr.mxu0 0.0
      %1139 = vmatpush1.msra.mxu0 0.0
      %1140 = vmatprep.subr.mxu0 0.0
      %1141 = vmatpush1.msra.mxu0 0.0
      %1142 = vmatprep.subr.mxu0 0.0
      %1143 = vmatpush1.msra.mxu0 0.0
      %1144 = vmatprep.subr.mxu0 0.0
      %1145 = vmatpush1.msra.mxu0 0.0
      %1146 = vmatprep.subr.mxu0 0.0
      %1147 = vmatpush1.msra.mxu0 0.0
      %1148 = vmatprep.subr.mxu0 0.0
      %1149 = vmatpush1.msra.mxu0 0.0
      %1150 = vmatprep.subr.mxu0 0.0
      %1151 = vmatpush1.msra.mxu0 0.0
      %1152 = vmatprep.subr.mxu0 0.0
      %1153 = vmatpush1.msra.mxu0 0.0
      %1154 = vmatprep.subr.mxu0 0.0
      %1155 = vmatpush1.msra.mxu0 0.0
      %1156 = vmatprep.subr.mxu0 0.0
      %1157 = vmatpush1.msra.mxu0 0.0
      %1158 = vmatprep.subr.mxu0 0.0
      %1159 = vmatpush1.msra.mxu0 0.0
      %1160 = vmatprep.subr.mxu0 0.0
      %1161 = vmatpush1.msra.mxu0 0.0
      %1162 = vmatprep.subr.mxu0 0.0
      %1163 = vmatpush1.msra.mxu0 0.0
      %1164 = vmatprep.subr.mxu0 0.0
      %1165 = vmatpush1.msra.mxu0 0.0
      %1166 = vmatprep.subr.mxu0 0.0
      %1167 = vmatpush1.msra.mxu0 0.0
      %1168 = vmatprep.subr.mxu0 0.0
      %1169 = vmatpush1.msra.mxu0 0.0
      %1170 = vmatprep.subr.mxu0 0.0
      %1171 = vmatpush1.msra.mxu0 0.0
      %1172 = vmatprep.subr.mxu0 0.0
      %1173 = vmatpush1.msra.mxu0 0.0
      %1174 = vmatprep.subr.mxu0 0.0
      %1175 = vmatpush1.msra.mxu0 0.0
      %1176 = vmatprep.subr.mxu0 0.0
      %1177 = vmatpush1.msra.mxu0 0.0
      %1178 = vmatprep.subr.mxu0 0.0
      %1179 = vmatpush1.msra.mxu0 0.0
      %1180 = vmatprep.subr.mxu0 0.0
      %1181 = vmatpush1.msra.mxu0 0.0
      %1182 = vmatprep.subr.mxu0 0.0
      %1183 = vmatpush1.msra.mxu0 0.0
      %1184 = vmatprep.subr.mxu0 0.0
      %1185 = vmatpush1.msra.mxu0 0.0
      %1186 = vmatprep.subr.mxu0 0.0
      %1187 = vmatpush1.msra.mxu0 0.0
      %1188 = vmatprep.subr.mxu0 0.0
      %1189 = vmatpush1.msra.mxu0 0.0
      %1190 = vmatprep.subr.mxu0 0.0
      %1191 = vmatpush1.msra.mxu0 0.0
      %1192 = vmatprep.mubr.f32.mxu0 0.0
      %1193 = vmatmul.mubr.f32.gmra.mrb[0].mxu0 %v1120
      %v1194 = vpop.f32.mrb[0].mxu0
      %v1195 = vadd.f32 0.0, %v1194
      %v1196 = vpop.f32.mrb[0].mxu0
      %v1197 = vadd.f32 0.0, %v1196
      %1198 = vdwg.mxu0
      %1199 = vmatprep.subr.mxu0 0.0
      %1200 = vmatpush1.msra.mxu0 %v1126
      %1201 = vmatprep.subr.mxu0 0.0
      %1202 = vmatpush1.msra.mxu0 0.0
      %1203 = vmatprep.subr.mxu0 0.0
      %1204 = vmatpush1.msra.mxu0 0.0
      %1205 = vmatprep.subr.mxu0 0.0
      %1206 = vmatpush1.msra.mxu0 0.0
      %1207 = vmatprep.subr.mxu0 0.0
      %1208 = vmatpush1.msra.mxu0 0.0
      %1209 = vmatprep.subr.mxu0 0.0
      %1210 = vmatpush1.msra.mxu0 0.0
      %1211 = vmatprep.subr.mxu0 0.0
      %1212 = vmatpush1.msra.mxu0 0.0
      %1213 = vmatprep.subr.mxu0 0.0
      %1214 = vmatpush1.msra.mxu0 0.0
      %1215 = vmatprep.subr.mxu0 0.0
      %1216 = vmatpush1.msra.mxu0 0.0
      %1217 = vmatprep.subr.mxu0 0.0
      %1218 = vmatpush1.msra.mxu0 0.0
      %1219 = vmatprep.subr.mxu0 0.0
      %1220 = vmatpush1.msra.mxu0 0.0
      %1221 = vmatprep.subr.mxu0 0.0
      %1222 = vmatpush1.msra.mxu0 0.0
      %1223 = vmatprep.subr.mxu0 0.0
      %1224 = vmatpush1.msra.mxu0 0.0
      %1225 = vmatprep.subr.mxu0 0.0
      %1226 = vmatpush1.msra.mxu0 0.0
      %1227 = vmatprep.subr.mxu0 0.0
      %1228 = vmatpush1.msra.mxu0 0.0
      %1229 = vmatprep.subr.mxu0 0.0
      %1230 = vmatpush1.msra.mxu0 0.0
      %1231 = vmatprep.subr.mxu0 0.0
      %1232 = vmatpush1.msra.mxu0 0.0
      %1233 = vmatprep.subr.mxu0 0.0
      %1234 = vmatpush1.msra.mxu0 0.0
      %1235 = vmatprep.subr.mxu0 0.0
      %1236 = vmatpush1.msra.mxu0 0.0
      %1237 = vmatprep.subr.mxu0 0.0
      %1238 = vmatpush1.msra.mxu0 0.0
      %1239 = vmatprep.subr.mxu0 0.0
      %1240 = vmatpush1.msra.mxu0 0.0
      %1241 = vmatprep.subr.mxu0 0.0
      %1242 = vmatpush1.msra.mxu0 0.0
      %1243 = vmatprep.subr.mxu0 0.0
      %1244 = vmatpush1.msra.mxu0 0.0
      %1245 = vmatprep.subr.mxu0 0.0
      %1246 = vmatpush1.msra.mxu0 0.0
      %1247 = vmatprep.subr.mxu0 0.0
      %1248 = vmatpush1.msra.mxu0 0.0
      %1249 = vmatprep.subr.mxu0 0.0
      %1250 = vmatpush1.msra.mxu0 0.0
      %1251 = vmatprep.subr.mxu0 0.0
      %1252 = vmatpush1.msra.mxu0 0.0
      %1253 = vmatprep.subr.mxu0 0.0
      %1254 = vmatpush1.msra.mxu0 0.0
      %1255 = vmatprep.subr.mxu0 0.0
      %1256 = vmatpush1.msra.mxu0 0.0
      %1257 = vmatprep.subr.mxu0 0.0
      %1258 = vmatpush1.msra.mxu0 0.0
      %1259 = vmatprep.subr.mxu0 0.0
      %1260 = vmatpush1.msra.mxu0 0.0
      %1261 = vmatprep.subr.mxu0 0.0
      %1262 = vmatpush1.msra.mxu0 0.0
      %1263 = vmatprep.mubr.f32.mxu0 0.0
      %1264 = vmatmul.mubr.f32.gmra.mrb[0].mxu0 %v1120
      %v1265 = vpop.f32.mrb[0].mxu0
      %v1266 = vadd.f32 0.0, %v1265
      %v1267 = vpop.f32.mrb[0].mxu0
      %1268 = vdwg.mxu0
      %v1269 = vadd.f32 %v1102, %v1195
      %v1270 = vadd.f32 %v1103, %v1197
      %v1271 = vadd.f32 %v1104, %v1266
      %s1272 = scalar_lea.vmem %s2, 48
      %v1273 = vld [vmem:[%s1272] sm:$0xff]
      %1274 = vrot.lane.b32.xlu0 %v280, 92
      %v1275 = vpop.permute.xlu0 %1274
      %1276 = vrot.lane.b32.xlu0 %v285, 92
      %v1277 = vpop.permute.xlu0 %1276
      %1278 = vrot.lane.b32.xlu0 %v281, 92
      %v1279 = vpop.permute.xlu0 %1278
      %1280 = vrot.lane.b32.xlu0 %v282, 92
      %v1281 = vpop.permute.xlu0 %1280
      %vm1282 = vcmask 752640
      %v1283 = vsel %vm1282, %v1275, %v1277
      %v1284 = vsel %vm1282, %v1277, %v1279
      %v1285 = vsel %vm1282, %v1279, %v1281
      %v1287 = vsel %vm302, %v1273, 0
      %v1289 = vsel %vm306, %v1283, 0
      %v1291 = vsel %vm306, %v1284, 0
      %v1293 = vsel %vm306, %v1285, 0
      %1295 = vmatprep.subr.mxu0 %v1291
      %1296 = vmatpush1.msra.mxu0 %v1289
      %1297 = vmatprep.subr.mxu0 0.0
      %1298 = vmatpush1.msra.mxu0 0.0
      %1299 = vmatprep.subr.mxu0 0.0
      %1300 = vmatpush1.msra.mxu0 0.0
      %1301 = vmatprep.subr.mxu0 0.0
      %1302 = vmatpush1.msra.mxu0 0.0
      %1303 = vmatprep.subr.mxu0 0.0
      %1304 = vmatpush1.msra.mxu0 0.0
      %1305 = vmatprep.subr.mxu0 0.0
      %1306 = vmatpush1.msra.mxu0 0.0
      %1307 = vmatprep.subr.mxu0 0.0
      %1308 = vmatpush1.msra.mxu0 0.0
      %1309 = vmatprep.subr.mxu0 0.0
      %1310 = vmatpush1.msra.mxu0 0.0
      %1311 = vmatprep.subr.mxu0 0.0
      %1312 = vmatpush1.msra.mxu0 0.0
      %1313 = vmatprep.subr.mxu0 0.0
      %1314 = vmatpush1.msra.mxu0 0.0
      %1315 = vmatprep.subr.mxu0 0.0
      %1316 = vmatpush1.msra.mxu0 0.0
      %1317 = vmatprep.subr.mxu0 0.0
      %1318 = vmatpush1.msra.mxu0 0.0
      %1319 = vmatprep.subr.mxu0 0.0
      %1320 = vmatpush1.msra.mxu0 0.0
      %1321 = vmatprep.subr.mxu0 0.0
      %1322 = vmatpush1.msra.mxu0 0.0
      %1323 = vmatprep.subr.mxu0 0.0
      %1324 = vmatpush1.msra.mxu0 0.0
      %1325 = vmatprep.subr.mxu0 0.0
      %1326 = vmatpush1.msra.mxu0 0.0
      %1327 = vmatprep.subr.mxu0 0.0
      %1328 = vmatpush1.msra.mxu0 0.0
      %1329 = vmatprep.subr.mxu0 0.0
      %1330 = vmatpush1.msra.mxu0 0.0
      %1331 = vmatprep.subr.mxu0 0.0
      %1332 = vmatpush1.msra.mxu0 0.0
      %1333 = vmatprep.subr.mxu0 0.0
      %1334 = vmatpush1.msra.mxu0 0.0
      %1335 = vmatprep.subr.mxu0 0.0
      %1336 = vmatpush1.msra.mxu0 0.0
      %1337 = vmatprep.subr.mxu0 0.0
      %1338 = vmatpush1.msra.mxu0 0.0
      %1339 = vmatprep.subr.mxu0 0.0
      %1340 = vmatpush1.msra.mxu0 0.0
      %1341 = vmatprep.subr.mxu0 0.0
      %1342 = vmatpush1.msra.mxu0 0.0
      %1343 = vmatprep.subr.mxu0 0.0
      %1344 = vmatpush1.msra.mxu0 0.0
      %1345 = vmatprep.subr.mxu0 0.0
      %1346 = vmatpush1.msra.mxu0 0.0
      %1347 = vmatprep.subr.mxu0 0.0
      %1348 = vmatpush1.msra.mxu0 0.0
      %1349 = vmatprep.subr.mxu0 0.0
      %1350 = vmatpush1.msra.mxu0 0.0
      %1351 = vmatprep.subr.mxu0 0.0
      %1352 = vmatpush1.msra.mxu0 0.0
      %1353 = vmatprep.subr.mxu0 0.0
      %1354 = vmatpush1.msra.mxu0 0.0
      %1355 = vmatprep.subr.mxu0 0.0
      %1356 = vmatpush1.msra.mxu0 0.0
      %1357 = vmatprep.subr.mxu0 0.0
      %1358 = vmatpush1.msra.mxu0 0.0
      %1359 = vmatprep.mubr.f32.mxu0 0.0
      %1360 = vmatmul.mubr.f32.gmra.mrb[0].mxu0 %v1287
      %v1361 = vpop.f32.mrb[0].mxu0
      %v1362 = vadd.f32 0.0, %v1361
      %v1363 = vpop.f32.mrb[0].mxu0
      %v1364 = vadd.f32 0.0, %v1363
      %1365 = vdwg.mxu0
      %1366 = vmatprep.subr.mxu0 0.0
      %1367 = vmatpush1.msra.mxu0 %v1293
      %1368 = vmatprep.subr.mxu0 0.0
      %1369 = vmatpush1.msra.mxu0 0.0
      %1370 = vmatprep.subr.mxu0 0.0
      %1371 = vmatpush1.msra.mxu0 0.0
      %1372 = vmatprep.subr.mxu0 0.0
      %1373 = vmatpush1.msra.mxu0 0.0
      %1374 = vmatprep.subr.mxu0 0.0
      %1375 = vmatpush1.msra.mxu0 0.0
      %1376 = vmatprep.subr.mxu0 0.0
      %1377 = vmatpush1.msra.mxu0 0.0
      %1378 = vmatprep.subr.mxu0 0.0
      %1379 = vmatpush1.msra.mxu0 0.0
      %1380 = vmatprep.subr.mxu0 0.0
      %1381 = vmatpush1.msra.mxu0 0.0
      %1382 = vmatprep.subr.mxu0 0.0
      %1383 = vmatpush1.msra.mxu0 0.0
      %1384 = vmatprep.subr.mxu0 0.0
      %1385 = vmatpush1.msra.mxu0 0.0
      %1386 = vmatprep.subr.mxu0 0.0
      %1387 = vmatpush1.msra.mxu0 0.0
      %1388 = vmatprep.subr.mxu0 0.0
      %1389 = vmatpush1.msra.mxu0 0.0
      %1390 = vmatprep.subr.mxu0 0.0
      %1391 = vmatpush1.msra.mxu0 0.0
      %1392 = vmatprep.subr.mxu0 0.0
      %1393 = vmatpush1.msra.mxu0 0.0
      %1394 = vmatprep.subr.mxu0 0.0
      %1395 = vmatpush1.msra.mxu0 0.0
      %1396 = vmatprep.subr.mxu0 0.0
      %1397 = vmatpush1.msra.mxu0 0.0
      %1398 = vmatprep.subr.mxu0 0.0
      %1399 = vmatpush1.msra.mxu0 0.0
      %1400 = vmatprep.subr.mxu0 0.0
      %1401 = vmatpush1.msra.mxu0 0.0
      %1402 = vmatprep.subr.mxu0 0.0
      %1403 = vmatpush1.msra.mxu0 0.0
      %1404 = vmatprep.subr.mxu0 0.0
      %1405 = vmatpush1.msra.mxu0 0.0
      %1406 = vmatprep.subr.mxu0 0.0
      %1407 = vmatpush1.msra.mxu0 0.0
      %1408 = vmatprep.subr.mxu0 0.0
      %1409 = vmatpush1.msra.mxu0 0.0
      %1410 = vmatprep.subr.mxu0 0.0
      %1411 = vmatpush1.msra.mxu0 0.0
      %1412 = vmatprep.subr.mxu0 0.0
      %1413 = vmatpush1.msra.mxu0 0.0
      %1414 = vmatprep.subr.mxu0 0.0
      %1415 = vmatpush1.msra.mxu0 0.0
      %1416 = vmatprep.subr.mxu0 0.0
      %1417 = vmatpush1.msra.mxu0 0.0
      %1418 = vmatprep.subr.mxu0 0.0
      %1419 = vmatpush1.msra.mxu0 0.0
      %1420 = vmatprep.subr.mxu0 0.0
      %1421 = vmatpush1.msra.mxu0 0.0
      %1422 = vmatprep.subr.mxu0 0.0
      %1423 = vmatpush1.msra.mxu0 0.0
      %1424 = vmatprep.subr.mxu0 0.0
      %1425 = vmatpush1.msra.mxu0 0.0
      %1426 = vmatprep.subr.mxu0 0.0
      %1427 = vmatpush1.msra.mxu0 0.0
      %1428 = vmatprep.subr.mxu0 0.0
      %1429 = vmatpush1.msra.mxu0 0.0
      %1430 = vmatprep.mubr.f32.mxu0 0.0
      %1431 = vmatmul.mubr.f32.gmra.mrb[0].mxu0 %v1287
      %v1432 = vpop.f32.mrb[0].mxu0
      %v1433 = vadd.f32 0.0, %v1432
      %v1434 = vpop.f32.mrb[0].mxu0
      %1435 = vdwg.mxu0
      %v1436 = vadd.f32 %v1269, %v1362
      %v1437 = vadd.f32 %v1270, %v1364
      %v1438 = vadd.f32 %v1271, %v1433
      %s1439 = scalar_lea.vmem %s2, 56
      %v1440 = vld [vmem:[%s1439] sm:$0xff]
      %1441 = vrot.lane.b32.xlu0 %v280, 91
      %v1442 = vpop.permute.xlu0 %1441
      %1443 = vrot.lane.b32.xlu0 %v285, 91
      %v1444 = vpop.permute.xlu0 %1443
      %1445 = vrot.lane.b32.xlu0 %v281, 91
      %v1446 = vpop.permute.xlu0 %1445
      %1447 = vrot.lane.b32.xlu0 %v282, 91
      %v1448 = vpop.permute.xlu0 %1447
      %vm1449 = vcmask 744448
      %v1450 = vsel %vm1449, %v1442, %v1444
      %v1451 = vsel %vm1449, %v1444, %v1446
      %v1452 = vsel %vm1449, %v1446, %v1448
      %v1454 = vsel %vm302, %v1440, 0
      %v1456 = vsel %vm306, %v1450, 0
      %v1458 = vsel %vm306, %v1451, 0
      %v1460 = vsel %vm306, %v1452, 0
      %1462 = vmatprep.subr.mxu0 %v1458
      %1463 = vmatpush1.msra.mxu0 %v1456
      %1464 = vmatprep.subr.mxu0 0.0
      %1465 = vmatpush1.msra.mxu0 0.0
      %1466 = vmatprep.subr.mxu0 0.0
      %1467 = vmatpush1.msra.mxu0 0.0
      %1468 = vmatprep.subr.mxu0 0.0
      %1469 = vmatpush1.msra.mxu0 0.0
      %1470 = vmatprep.subr.mxu0 0.0
      %1471 = vmatpush1.msra.mxu0 0.0
      %1472 = vmatprep.subr.mxu0 0.0
      %1473 = vmatpush1.msra.mxu0 0.0
      %1474 = vmatprep.subr.mxu0 0.0
      %1475 = vmatpush1.msra.mxu0 0.0
      %1476 = vmatprep.subr.mxu0 0.0
      %1477 = vmatpush1.msra.mxu0 0.0
      %1478 = vmatprep.subr.mxu0 0.0
      %1479 = vmatpush1.msra.mxu0 0.0
      %1480 = vmatprep.subr.mxu0 0.0
      %1481 = vmatpush1.msra.mxu0 0.0
      %1482 = vmatprep.subr.mxu0 0.0
      %1483 = vmatpush1.msra.mxu0 0.0
      %1484 = vmatprep.subr.mxu0 0.0
      %1485 = vmatpush1.msra.mxu0 0.0
      %1486 = vmatprep.subr.mxu0 0.0
      %1487 = vmatpush1.msra.mxu0 0.0
      %1488 = vmatprep.subr.mxu0 0.0
      %1489 = vmatpush1.msra.mxu0 0.0
      %1490 = vmatprep.subr.mxu0 0.0
      %1491 = vmatpush1.msra.mxu0 0.0
      %1492 = vmatprep.subr.mxu0 0.0
      %1493 = vmatpush1.msra.mxu0 0.0
      %1494 = vmatprep.subr.mxu0 0.0
      %1495 = vmatpush1.msra.mxu0 0.0
      %1496 = vmatprep.subr.mxu0 0.0
      %1497 = vmatpush1.msra.mxu0 0.0
      %1498 = vmatprep.subr.mxu0 0.0
      %1499 = vmatpush1.msra.mxu0 0.0
      %1500 = vmatprep.subr.mxu0 0.0
      %1501 = vmatpush1.msra.mxu0 0.0
      %1502 = vmatprep.subr.mxu0 0.0
      %1503 = vmatpush1.msra.mxu0 0.0
      %1504 = vmatprep.subr.mxu0 0.0
      %1505 = vmatpush1.msra.mxu0 0.0
      %1506 = vmatprep.subr.mxu0 0.0
      %1507 = vmatpush1.msra.mxu0 0.0
      %1508 = vmatprep.subr.mxu0 0.0
      %1509 = vmatpush1.msra.mxu0 0.0
      %1510 = vmatprep.subr.mxu0 0.0
      %1511 = vmatpush1.msra.mxu0 0.0
      %1512 = vmatprep.subr.mxu0 0.0
      %1513 = vmatpush1.msra.mxu0 0.0
      %1514 = vmatprep.subr.mxu0 0.0
      %1515 = vmatpush1.msra.mxu0 0.0
      %1516 = vmatprep.subr.mxu0 0.0
      %1517 = vmatpush1.msra.mxu0 0.0
      %1518 = vmatprep.subr.mxu0 0.0
      %1519 = vmatpush1.msra.mxu0 0.0
      %1520 = vmatprep.subr.mxu0 0.0
      %1521 = vmatpush1.msra.mxu0 0.0
      %1522 = vmatprep.subr.mxu0 0.0
      %1523 = vmatpush1.msra.mxu0 0.0
      %1524 = vmatprep.subr.mxu0 0.0
      %1525 = vmatpush1.msra.mxu0 0.0
      %1526 = vmatprep.mubr.f32.mxu0 0.0
      %1527 = vmatmul.mubr.f32.gmra.mrb[0].mxu0 %v1454
      %v1528 = vpop.f32.mrb[0].mxu0
      %v1529 = vadd.f32 0.0, %v1528
      %v1530 = vpop.f32.mrb[0].mxu0
      %v1531 = vadd.f32 0.0, %v1530
      %1532 = vdwg.mxu0
      %1533 = vmatprep.subr.mxu0 0.0
      %1534 = vmatpush1.msra.mxu0 %v1460
      %1535 = vmatprep.subr.mxu0 0.0
      %1536 = vmatpush1.msra.mxu0 0.0
      %1537 = vmatprep.subr.mxu0 0.0
      %1538 = vmatpush1.msra.mxu0 0.0
      %1539 = vmatprep.subr.mxu0 0.0
      %1540 = vmatpush1.msra.mxu0 0.0
      %1541 = vmatprep.subr.mxu0 0.0
      %1542 = vmatpush1.msra.mxu0 0.0
      %1543 = vmatprep.subr.mxu0 0.0
      %1544 = vmatpush1.msra.mxu0 0.0
      %1545 = vmatprep.subr.mxu0 0.0
      %1546 = vmatpush1.msra.mxu0 0.0
      %1547 = vmatprep.subr.mxu0 0.0
      %1548 = vmatpush1.msra.mxu0 0.0
      %1549 = vmatprep.subr.mxu0 0.0
      %1550 = vmatpush1.msra.mxu0 0.0
      %1551 = vmatprep.subr.mxu0 0.0
      %1552 = vmatpush1.msra.mxu0 0.0
      %1553 = vmatprep.subr.mxu0 0.0
      %1554 = vmatpush1.msra.mxu0 0.0
      %1555 = vmatprep.subr.mxu0 0.0
      %1556 = vmatpush1.msra.mxu0 0.0
      %1557 = vmatprep.subr.mxu0 0.0
      %1558 = vmatpush1.msra.mxu0 0.0
      %1559 = vmatprep.subr.mxu0 0.0
      %1560 = vmatpush1.msra.mxu0 0.0
      %1561 = vmatprep.subr.mxu0 0.0
      %1562 = vmatpush1.msra.mxu0 0.0
      %1563 = vmatprep.subr.mxu0 0.0
      %1564 = vmatpush1.msra.mxu0 0.0
      %1565 = vmatprep.subr.mxu0 0.0
      %1566 = vmatpush1.msra.mxu0 0.0
      %1567 = vmatprep.subr.mxu0 0.0
      %1568 = vmatpush1.msra.mxu0 0.0
      %1569 = vmatprep.subr.mxu0 0.0
      %1570 = vmatpush1.msra.mxu0 0.0
      %1571 = vmatprep.subr.mxu0 0.0
      %1572 = vmatpush1.msra.mxu0 0.0
      %1573 = vmatprep.subr.mxu0 0.0
      %1574 = vmatpush1.msra.mxu0 0.0
      %1575 = vmatprep.subr.mxu0 0.0
      %1576 = vmatpush1.msra.mxu0 0.0
      %1577 = vmatprep.subr.mxu0 0.0
      %1578 = vmatpush1.msra.mxu0 0.0
      %1579 = vmatprep.subr.mxu0 0.0
      %1580 = vmatpush1.msra.mxu0 0.0
      %1581 = vmatprep.subr.mxu0 0.0
      %1582 = vmatpush1.msra.mxu0 0.0
      %1583 = vmatprep.subr.mxu0 0.0
      %1584 = vmatpush1.msra.mxu0 0.0
      %1585 = vmatprep.subr.mxu0 0.0
      %1586 = vmatpush1.msra.mxu0 0.0
      %1587 = vmatprep.subr.mxu0 0.0
      %1588 = vmatpush1.msra.mxu0 0.0
      %1589 = vmatprep.subr.mxu0 0.0
      %1590 = vmatpush1.msra.mxu0 0.0
      %1591 = vmatprep.subr.mxu0 0.0
      %1592 = vmatpush1.msra.mxu0 0.0
      %1593 = vmatprep.subr.mxu0 0.0
      %1594 = vmatpush1.msra.mxu0 0.0
      %1595 = vmatprep.subr.mxu0 0.0
      %1596 = vmatpush1.msra.mxu0 0.0
      %1597 = vmatprep.mubr.f32.mxu0 0.0
      %1598 = vmatmul.mubr.f32.gmra.mrb[0].mxu0 %v1454
      %v1599 = vpop.f32.mrb[0].mxu0
      %v1600 = vadd.f32 0.0, %v1599
      %v1601 = vpop.f32.mrb[0].mxu0
      %1602 = vdwg.mxu0
      %v1603 = vadd.f32 %v1436, %v1529
      %v1604 = vadd.f32 %v1437, %v1531
      %v1605 = vadd.f32 %v1438, %v1600
      %s1606 = scalar_lea.vmem %s2, 64
      %v1607 = vld [vmem:[%s1606] sm:$0xff]
      %1608 = vrot.lane.b32.xlu0 %v280, 90
      %v1609 = vpop.permute.xlu0 %1608
      %1610 = vrot.lane.b32.xlu0 %v285, 90
      %v1611 = vpop.permute.xlu0 %1610
      %1612 = vrot.lane.b32.xlu0 %v281, 90
      %v1613 = vpop.permute.xlu0 %1612
      %1614 = vrot.lane.b32.xlu0 %v282, 90
      %v1615 = vpop.permute.xlu0 %1614
      %vm1616 = vcmask 736256
      %v1617 = vsel %vm1616, %v1609, %v1611
      %v1618 = vsel %vm1616, %v1611, %v1613
      %v1619 = vsel %vm1616, %v1613, %v1615
      %v1621 = vsel %vm302, %v1607, 0
      %v1623 = vsel %vm306, %v1617, 0
      %v1625 = vsel %vm306, %v1618, 0
      %v1627 = vsel %vm306, %v1619, 0
      %1629 = vmatprep.subr.mxu0 %v1625
      %1630 = vmatpush1.msra.mxu0 %v1623
      %1631 = vmatprep.subr.mxu0 0.0
      %1632 = vmatpush1.msra.mxu0 0.0
      %1633 = vmatprep.subr.mxu0 0.0
      %1634 = vmatpush1.msra.mxu0 0.0
      %1635 = vmatprep.subr.mxu0 0.0
      %1636 = vmatpush1.msra.mxu0 0.0
      %1637 = vmatprep.subr.mxu0 0.0
      %1638 = vmatpush1.msra.mxu0 0.0
      %1639 = vmatprep.subr.mxu0 0.0
      %1640 = vmatpush1.msra.mxu0 0.0
      %1641 = vmatprep.subr.mxu0 0.0
      %1642 = vmatpush1.msra.mxu0 0.0
      %1643 = vmatprep.subr.mxu0 0.0
      %1644 = vmatpush1.msra.mxu0 0.0
      %1645 = vmatprep.subr.mxu0 0.0
      %1646 = vmatpush1.msra.mxu0 0.0
      %1647 = vmatprep.subr.mxu0 0.0
      %1648 = vmatpush1.msra.mxu0 0.0
      %1649 = vmatprep.subr.mxu0 0.0
      %1650 = vmatpush1.msra.mxu0 0.0
      %1651 = vmatprep.subr.mxu0 0.0
      %1652 = vmatpush1.msra.mxu0 0.0
      %1653 = vmatprep.subr.mxu0 0.0
      %1654 = vmatpush1.msra.mxu0 0.0
      %1655 = vmatprep.subr.mxu0 0.0
      %1656 = vmatpush1.msra.mxu0 0.0
      %1657 = vmatprep.subr.mxu0 0.0
      %1658 = vmatpush1.msra.mxu0 0.0
      %1659 = vmatprep.subr.mxu0 0.0
      %1660 = vmatpush1.msra.mxu0 0.0
      %1661 = vmatprep.subr.mxu0 0.0
      %1662 = vmatpush1.msra.mxu0 0.0
      %1663 = vmatprep.subr.mxu0 0.0
      %1664 = vmatpush1.msra.mxu0 0.0
      %1665 = vmatprep.subr.mxu0 0.0
      %1666 = vmatpush1.msra.mxu0 0.0
      %1667 = vmatprep.subr.mxu0 0.0
      %1668 = vmatpush1.msra.mxu0 0.0
      %1669 = vmatprep.subr.mxu0 0.0
      %1670 = vmatpush1.msra.mxu0 0.0
      %1671 = vmatprep.subr.mxu0 0.0
      %1672 = vmatpush1.msra.mxu0 0.0
      %1673 = vmatprep.subr.mxu0 0.0
      %1674 = vmatpush1.msra.mxu0 0.0
      %1675 = vmatprep.subr.mxu0 0.0
      %1676 = vmatpush1.msra.mxu0 0.0
      %1677 = vmatprep.subr.mxu0 0.0
      %1678 = vmatpush1.msra.mxu0 0.0
      %1679 = vmatprep.subr.mxu0 0.0
      %1680 = vmatpush1.msra.mxu0 0.0
      %1681 = vmatprep.subr.mxu0 0.0
      %1682 = vmatpush1.msra.mxu0 0.0
      %1683 = vmatprep.subr.mxu0 0.0
      %1684 = vmatpush1.msra.mxu0 0.0
      %1685 = vmatprep.subr.mxu0 0.0
      %1686 = vmatpush1.msra.mxu0 0.0
      %1687 = vmatprep.subr.mxu0 0.0
      %1688 = vmatpush1.msra.mxu0 0.0
      %1689 = vmatprep.subr.mxu0 0.0
      %1690 = vmatpush1.msra.mxu0 0.0
      %1691 = vmatprep.subr.mxu0 0.0
      %1692 = vmatpush1.msra.mxu0 0.0
      %1693 = vmatprep.mubr.f32.mxu0 0.0
      %1694 = vmatmul.mubr.f32.gmra.mrb[0].mxu0 %v1621
      %v1695 = vpop.f32.mrb[0].mxu0
      %v1696 = vadd.f32 0.0, %v1695
      %v1697 = vpop.f32.mrb[0].mxu0
      %v1698 = vadd.f32 0.0, %v1697
      %1699 = vdwg.mxu0
      %1700 = vmatprep.subr.mxu0 0.0
      %1701 = vmatpush1.msra.mxu0 %v1627
      %1702 = vmatprep.subr.mxu0 0.0
      %1703 = vmatpush1.msra.mxu0 0.0
      %1704 = vmatprep.subr.mxu0 0.0
      %1705 = vmatpush1.msra.mxu0 0.0
      %1706 = vmatprep.subr.mxu0 0.0
      %1707 = vmatpush1.msra.mxu0 0.0
      %1708 = vmatprep.subr.mxu0 0.0
      %1709 = vmatpush1.msra.mxu0 0.0
      %1710 = vmatprep.subr.mxu0 0.0
      %1711 = vmatpush1.msra.mxu0 0.0
      %1712 = vmatprep.subr.mxu0 0.0
      %1713 = vmatpush1.msra.mxu0 0.0
      %1714 = vmatprep.subr.mxu0 0.0
      %1715 = vmatpush1.msra.mxu0 0.0
      %1716 = vmatprep.subr.mxu0 0.0
      %1717 = vmatpush1.msra.mxu0 0.0
      %1718 = vmatprep.subr.mxu0 0.0
      %1719 = vmatpush1.msra.mxu0 0.0
      %1720 = vmatprep.subr.mxu0 0.0
      %1721 = vmatpush1.msra.mxu0 0.0
      %1722 = vmatprep.subr.mxu0 0.0
      %1723 = vmatpush1.msra.mxu0 0.0
      %1724 = vmatprep.subr.mxu0 0.0
      %1725 = vmatpush1.msra.mxu0 0.0
      %1726 = vmatprep.subr.mxu0 0.0
      %1727 = vmatpush1.msra.mxu0 0.0
      %1728 = vmatprep.subr.mxu0 0.0
      %1729 = vmatpush1.msra.mxu0 0.0
      %1730 = vmatprep.subr.mxu0 0.0
      %1731 = vmatpush1.msra.mxu0 0.0
      %1732 = vmatprep.subr.mxu0 0.0
      %1733 = vmatpush1.msra.mxu0 0.0
      %1734 = vmatprep.subr.mxu0 0.0
      %1735 = vmatpush1.msra.mxu0 0.0
      %1736 = vmatprep.subr.mxu0 0.0
      %1737 = vmatpush1.msra.mxu0 0.0
      %1738 = vmatprep.subr.mxu0 0.0
      %1739 = vmatpush1.msra.mxu0 0.0
      %1740 = vmatprep.subr.mxu0 0.0
      %1741 = vmatpush1.msra.mxu0 0.0
      %1742 = vmatprep.subr.mxu0 0.0
      %1743 = vmatpush1.msra.mxu0 0.0
      %1744 = vmatprep.subr.mxu0 0.0
      %1745 = vmatpush1.msra.mxu0 0.0
      %1746 = vmatprep.subr.mxu0 0.0
      %1747 = vmatpush1.msra.mxu0 0.0
      %1748 = vmatprep.subr.mxu0 0.0
      %1749 = vmatpush1.msra.mxu0 0.0
      %1750 = vmatprep.subr.mxu0 0.0
      %1751 = vmatpush1.msra.mxu0 0.0
      %1752 = vmatprep.subr.mxu0 0.0
      %1753 = vmatpush1.msra.mxu0 0.0
      %1754 = vmatprep.subr.mxu0 0.0
      %1755 = vmatpush1.msra.mxu0 0.0
      %1756 = vmatprep.subr.mxu0 0.0
      %1757 = vmatpush1.msra.mxu0 0.0
      %1758 = vmatprep.subr.mxu0 0.0
      %1759 = vmatpush1.msra.mxu0 0.0
      %1760 = vmatprep.subr.mxu0 0.0
      %1761 = vmatpush1.msra.mxu0 0.0
      %1762 = vmatprep.subr.mxu0 0.0
      %1763 = vmatpush1.msra.mxu0 0.0
      %1764 = vmatprep.mubr.f32.mxu0 0.0
      %1765 = vmatmul.mubr.f32.gmra.mrb[0].mxu0 %v1621
      %v1766 = vpop.f32.mrb[0].mxu0
      %v1767 = vadd.f32 0.0, %v1766
      %v1768 = vpop.f32.mrb[0].mxu0
      %1769 = vdwg.mxu0
      %v1770 = vadd.f32 %v1603, %v1696
      %v1771 = vadd.f32 %v1604, %v1698
      %v1772 = vadd.f32 %v1605, %v1767
      %v1773 = vld [vmem:[%s3] sm:$0xff]
      %1775 = vset.pattern.permute.xlu0 0
      %1776 = vperm.xlu0 %1775, %v1773
      %v1777 = vpop.permute.xlu0 %1776
      %v1779 = vadd.f32 %v1770, %v1777
      %v1780 = vadd.f32 %v1771, %v1777
      %v1781 = vadd.f32 %v1772, %v1777
      %v1782 = vmax.f32 %v1779, 0.0
      %v1783 = vmax.f32 %v1780, 0.0
      %v1784 = vmax.f32 %v1781, 0.0
      %1785 = vst [vmem:[%s278] sm:$0xff] %v1782
      %1786 = vst [vmem:[%s278 + $0x8] sm:$0xff] %v1783
      %1787 = vst [vmem:[%s278 + $0x10] sm:$0xff] %v1784
      %s1788 = smul.u32 3, %s20
      %p1789 = scmp.lt.s32.totalorder %s19, 1
      %s1790 = scalar_select %p1789, %s19, 1
      %p1791 = scmp.lt.s32.totalorder %s1788, 2
      %s1792 = scalar_select %p1791, %s1788, 2
      %s1793 = smul.addr %s1790, 3
      %s1794 = sadd.s32 %s1792, %s1793
      %s1795 = smul.addr %s1794, 8
      %s1796 = scalar_lea.vmem %s4, %s1795
      // Predicated region
      $region37: #{conv_relu_block.1} parent=35 // pred_check
        %p1797 = pneg %p147
      $region38: #{conv_relu_block.1} parent=35 // pred_check_branch
        %1799 = sbr.rel (%p1797) target = $region40
      $region39: #{conv_relu_block.1} parent=35 // pred_region
        %s1800 = smul.u32 3, %s20
      $region40: #{conv_relu_block.1} parent=35 // pred_fallthru
        _
    $region36: #{conv_relu_block.1} parent=5 // pred_fallthru
      _
    %p1801 = scmp.le.s32.totalorder 2, %s10
    // Predicated region
    $region41: #{conv_relu_block.1} parent=5 // pred_check
      %p1802 = pneg %p1801
    $region42: #{conv_relu_block.1} parent=5 // pred_check_branch
      %1804 = sbr.rel (%p1802) target = $region44
    $region43: #{conv_relu_block.1} parent=5 // pred_region
      %s1805 = ssub.s32 %s10, 2
      // Predicated region
      $region45: #{conv_relu_block.1} parent=43 // pred_check
        %p1806 = pneg %p153
      $region46: #{conv_relu_block.1} parent=43 // pred_check_branch
        %1808 = sbr.rel (%p1806) target = $region48
      $region47: #{conv_relu_block.1} parent=43 // pred_region
        %s1809 = smul.u32 3, %s22
        %p1810 = scmp.lt.s32.totalorder %s21, 1
        %s1811 = scalar_select %p1810, %s21, 1
        %p1812 = scmp.lt.s32.totalorder %s1809, 2
        %s1813 = scalar_select %p1812, %s1809, 2
        %s1814 = smul.addr %s1811, 3
        %s1815 = sadd.s32 %s1813, %s1814
        %s1816 = smul.addr %s1815, 8
        %s1817 = scalar_lea.vmem %s4, %s1816
      $region48: #{conv_relu_block.1} parent=43 // pred_fallthru
        _
    $region44: #{conv_relu_block.1} parent=5 // pred_fallthru
      _
  $region6: #{conv_relu_block.1} parent=0 // loop_footer
    %s14 = sadd.s32 1, %s10
  $region7: #{conv_relu_block.1} parent=0 // loop_footer_branch
    %9 = sbr.rel target = $region3
  $region8: #{conv_relu_block.1} parent=0 // loop_exit
    _

</llo_original>
